<compile_context>
chip_gen: v6e
topology: v6e:2x2x1
jax: 0.10.0
libtpu: 0.0.40
codegen_flags: <defaults>
</compile_context>

<pallas_src>
import jax
import jax.numpy as jnp
from jax import lax
from jax.experimental import pallas as pl
from jax.experimental.pallas import tpu as pltpu

# --- synthetic sizes (module's 1024 / BART dims scaled down) -----------------
VOCAB = 512          # vocab_size
D_MODEL = 128        # d_model
MAX_LEN = 128        # stands in for the hard-coded 1024 in the module
PAD_ID = 1           # stands in for tokenizer.pad_token_id


# =============================================================================
# shared helper: exact row gather via one-hot MXU matmul
#   (table is VMEM-resident; 0*x terms are exactly 0 in f32, so this is exact)
# =============================================================================
def _gather_rows(ids_col, table):
    """ids_col: (T, 1) int32, table: (V, D) f32 -> (T, D) f32 == table[ids]."""
    t = ids_col.shape[0]
    v = table.shape[0]
    onehot = (lax.broadcasted_iota(jnp.int32, (t, v), 1) == ids_col)
    return jnp.dot(onehot.astype(table.dtype), table,
                   preferred_element_type=jnp.float32)


# =============================================================================
# Kernel A: fused embedding gather + GRUCell   (PyTorch nn.GRUCell semantics)
#   r = sigmoid(x Wir^T + b_ir + h Whr^T + b_hr)
#   z = sigmoid(x Wiz^T + b_iz + h Whz^T + b_hz)
#   n = tanh   (x Win^T + b_in + r * (h Whn^T + b_hn))
#   h' = (1 - z) * n + z * h   ==   n + z * (h - n)
# =============================================================================
def _fused_embed_gru_kernel(ids_ref, table_ref, h_ref, wih_ref, whh_ref,
                            brz_ref, bin_ref, bhn_ref, o_ref):
    d = h_ref.shape[-1]
    # gather x = table[ids] on the MXU (table resident in VMEM)
    x = _gather_rows(ids_ref[...], table_ref[...])                       # (tm, D)
    h = h_ref[...]                                                       # (tm, D)
    gi = jnp.dot(x, wih_ref[...], preferred_element_type=jnp.float32)    # (tm, 3D)
    gh = jnp.dot(h, whh_ref[...], preferred_element_type=jnp.float32)    # (tm, 3D)
    # r and z gates share a single pre-added bias (b_ih[:2D] + b_hh[:2D]);
    # the [:, :2D] / [:, 2D:] slices are lane-tile aligned (multiples of 128).
    rz = jax.nn.sigmoid(gi[:, :2 * d] + gh[:, :2 * d] + brz_ref[...])
    r = rz[:, :d]
    z = rz[:, d:]
    n = jnp.tanh(gi[:, 2 * d:] + bin_ref[...] + r * (gh[:, 2 * d:] + bhn_ref[...]))
    o_ref[...] = (n + z * (h - n)).astype(o_ref.dtype)


def fused_embed_gru(table, prev_ids, memory2d, gru_params, tm=128):
    """table: (V, D) f32, prev_ids: (N,) int32, memory2d: (N, D) f32 -> (N, D)."""
    n, d = memory2d.shape
    v = table.shape[0]
    assert n % tm == 0 and d % 128 == 0
    wih_t = gru_params["weight_ih"].T                             # (D, 3D)
    whh_t = gru_params["weight_hh"].T                             # (D, 3D)
    b_rz = (gru_params["bias_ih"][:2 * d]
            + gru_params["bias_hh"][:2 * d])[None, :]             # (1, 2D)
    b_in = gru_params["bias_ih"][2 * d:][None, :]                 # (1, D)
    b_hn = gru_params["bias_hh"][2 * d:][None, :]                 # (1, D)
    ids2d = prev_ids.reshape(n, 1).astype(jnp.int32)              # (N, 1)

    cost = pl.CostEstimate(
        flops=2 * n * v * d + 2 * (2 * n * d * 3 * d) + 12 * n * d,
        transcendentals=3 * n * d,
        bytes_accessed=4 * (n + v * d + 2 * n * d + 2 * d * 3 * d + 4 * d),
    )

    return pl.pallas_call(
        _fused_embed_gru_kernel,
        out_shape=jax.ShapeDtypeStruct((n, d), jnp.float32),
        grid=(n // tm,),
        in_specs=[
            pl.BlockSpec((tm, 1), lambda i: (i, 0)),              # token ids
            pl.BlockSpec((v, d), lambda i: (0, 0)),               # table (resident)
            pl.BlockSpec((tm, d), lambda i: (i, 0)),              # h tile (aliased)
            pl.BlockSpec((d, 3 * d), lambda i: (0, 0)),           # W_ih^T (resident)
            pl.BlockSpec((d, 3 * d), lambda i: (0, 0)),           # W_hh^T (resident)
            pl.BlockSpec((1, 2 * d), lambda i: (0, 0)),           # b_ir+b_hr | b_iz+b_hz
            pl.BlockSpec((1, d), lambda i: (0, 0)),               # b_in
            pl.BlockSpec((1, d), lambda i: (0, 0)),               # b_hn
        ],
        out_specs=pl.BlockSpec((tm, d), lambda i: (i, 0)),
        # old memory state is dead after the update -> write in place
        input_output_aliases={2: 0},
        cost_estimate=cost,
        compiler_params=pltpu.CompilerParams(
            dimension_semantics=("parallel",)),
    )(ids2d, table, memory2d, wih_t, whh_t, b_rz, b_in, b_hn)


# =============================================================================
# Kernel B: blocked embedding gather (prompt + input ids), single grid step,
#           lane+sublane-dense (L, D) output
# =============================================================================
def _embed_block_kernel(ids_ref, table_ref, out_ref):
    out_ref[...] = _gather_rows(ids_ref[...], table_ref[...]).astype(out_ref.dtype)


def embed(table, ids):
    """table: (V, D) f32, ids: (N,) int32 -> (N, D) f32."""
    n = ids.shape[0]
    v, d = table.shape
    ids2d = ids.reshape(n, 1).astype(jnp.int32)
    cost = pl.CostEstimate(
        flops=2 * n * v * d,
        transcendentals=0,
        bytes_accessed=4 * (n + v * d + n * d),
    )
    return pl.pallas_call(
        _embed_block_kernel,
        out_shape=jax.ShapeDtypeStruct((n, d), table.dtype),
        grid=(1,),
        in_specs=[
            pl.BlockSpec((n, 1), lambda i: (0, 0)),
            pl.BlockSpec((v, d), lambda i: (0, 0)),
        ],
        out_specs=pl.BlockSpec((n, d), lambda i: (0, 0)),
        cost_estimate=cost,
        compiler_params=pltpu.CompilerParams(
            dimension_semantics=("arbitrary",)),
    )(ids2d, table)


# =============================================================================
# Network forward (glue in plain JAX, compute in the kernels above)
# =============================================================================
def init_params(key):
    k1, k2, k3, k4, k5 = jax.random.split(key, 5)
    scale = 1.0 / jnp.sqrt(D_MODEL)
    return {
        "shared": jax.random.normal(k1, (VOCAB, D_MODEL), jnp.float32) * 0.02,
        "gru": {
            "weight_ih": jax.random.uniform(k2, (3 * D_MODEL, D_MODEL), jnp.float32,
                                            -scale, scale),
            "weight_hh": jax.random.uniform(k3, (3 * D_MODEL, D_MODEL), jnp.float32,
                                            -scale, scale),
            "bias_ih": jax.random.uniform(k4, (3 * D_MODEL,), jnp.float32,
                                          -scale, scale),
            "bias_hh": jax.random.uniform(k5, (3 * D_MODEL,), jnp.float32,
                                          -scale, scale),
        },
    }


def network_forward(params, memory, input_ids, attention_mask,
                    decoder_input_ids, decoder_attention_mask, labels,
                    output_hidden_states, prev_predictions, prompt_ids,
                    prompt_attention):
    # 1. left-pad prev_predictions with PAD_ID up to MAX_LEN
    pad_len = MAX_LEN - prev_predictions.shape[1]
    pad = jnp.full((1, pad_len), PAD_ID, dtype=jnp.int32)
    prev = jnp.concatenate([pad, prev_predictions.astype(jnp.int32)], axis=1)

    # 2 + 3. fused: embed(prev) -> GRUCell(prev_emb, memory)
    #   one pallas_call, no HBM round-trip for prev_emb, memory updated in place
    new_memory = fused_embed_gru(params["shared"], prev[0], memory[0],
                                 params["gru"], tm=128)[None]      # (1, MAX_LEN, D)

    # 4. input_ids = cat(prompt_ids, input_ids); inputs_embeds = shared(...)
    full_ids = jnp.concatenate(
        [prompt_ids.astype(jnp.int32), input_ids.astype(jnp.int32)], axis=1)
    inputs_embeds = embed(params["shared"], full_ids[0])[None]      # (1, L, D)

    # 5. attention_mask = cat(prompt_attention, attention_mask)
    full_attention = jnp.concatenate([prompt_attention, attention_mask], axis=1)

    # 6. outputs = self.bart(...)
    # TODO(synk): the memory-conditioned BART seq2seq forward is an external
    # pretrained model and is not reimplemented here; we return its prepared
    # inputs in place of `outputs`.
    outputs = {
        "inputs_embeds": inputs_embeds,
        "attention_mask": full_attention,
        "decoder_input_ids": decoder_input_ids,
        "decoder_attention_mask": decoder_attention_mask,
        "labels": labels,
        "memory": new_memory,
    }
    return outputs, new_memory


# =============================================================================
# reference implementations (plain JAX) for correctness check
# =============================================================================
def _gru_ref(x, h, p):
    gi = x @ p["weight_ih"].T + p["bias_ih"]
    gh = h @ p["weight_hh"].T + p["bias_hh"]
    d = h.shape[-1]
    r = jax.nn.sigmoid(gi[:, :d] + gh[:, :d])
    z = jax.nn.sigmoid(gi[:, d:2 * d] + gh[:, d:2 * d])
    n = jnp.tanh(gi[:, 2 * d:] + r * gh[:, 2 * d:])
    return (1.0 - z) * n + z * h


if __name__ == "__main__":
    key = jax.random.PRNGKey(0)
    k_mem, k_in, k_dec, k_lab, k_prev, k_prompt, k_par = jax.random.split(key, 7)

    PREV_LEN, PROMPT_LEN, SEQ_LEN, DEC_LEN = 16, 8, 8, 8

    params = init_params(k_par)

    memory = jax.random.normal(k_mem, (1, MAX_LEN, D_MODEL), jnp.float32)
    input_ids = jax.random.randint(k_in, (1, SEQ_LEN), 0, VOCAB, jnp.int32)
    attention_mask = jnp.ones((1, SEQ_LEN), jnp.int32)
    decoder_input_ids = jax.random.randint(k_dec, (1, DEC_LEN), 0, VOCAB, jnp.int32)
    decoder_attention_mask = jnp.ones((1, DEC_LEN), jnp.int32)
    labels = jax.random.randint(k_lab, (1, DEC_LEN), 0, VOCAB, jnp.int32)
    prev_predictions = jax.random.randint(k_prev, (1, PREV_LEN), 0, VOCAB, jnp.int32)
    prompt_ids = jax.random.randint(k_prompt, (1, PROMPT_LEN), 0, VOCAB, jnp.int32)
    prompt_attention = jnp.ones((1, PROMPT_LEN), jnp.int32)

    # --- plain-JAX references, computed BEFORE the kernel call (the GRU kernel
    #     aliases the memory buffer with its output) ---
    pad = jnp.full((1, MAX_LEN - PREV_LEN), PAD_ID, jnp.int32)
    prev = jnp.concatenate([pad, prev_predictions], axis=1)[0]
    prev_emb_ref = params["shared"][prev]                         # (MAX_LEN, D)
    mem_ref = _gru_ref(prev_emb_ref, memory[0], params["gru"])[None]
    full_ids = jnp.concatenate([prompt_ids, input_ids], axis=1)[0]
    embeds_ref = params["shared"][full_ids][None]
    jax.block_until_ready((mem_ref, embeds_ref))

    # --- run the Pallas-backed forward ---
    outputs, new_memory = network_forward(
        params, memory, input_ids, attention_mask, decoder_input_ids,
        decoder_attention_mask, labels, True, prev_predictions, prompt_ids,
        prompt_attention)
    jax.block_until_ready((outputs, new_memory))

    # --- correctness checks ---
    assert new_memory.shape == (1, MAX_LEN, D_MODEL)
    assert outputs["inputs_embeds"].shape == (1, PROMPT_LEN + SEQ_LEN, D_MODEL)
    assert outputs["attention_mask"].shape == (1, PROMPT_LEN + SEQ_LEN)
    assert jnp.allclose(new_memory, mem_ref, atol=1e-5, rtol=1e-5)
    assert jnp.allclose(outputs["inputs_embeds"], embeds_ref, atol=1e-5, rtol=1e-5)

    print("KERNEL_OK")
</pallas_src>

<mosaic_0001>
module attributes {stable_mosaic.version = 11 : i64} {
  func.func @_fused_embed_gru_kernel(%arg0: i32, %arg1: memref<128x1xi32, #tpu.memory_space<vmem>>, %arg2: memref<512x128xf32, #tpu.memory_space<vmem>>, %arg3: memref<128x128xf32, #tpu.memory_space<vmem>>, %arg4: memref<128x384xf32, #tpu.memory_space<vmem>>, %arg5: memref<128x384xf32, #tpu.memory_space<vmem>>, %arg6: memref<1x256xf32, #tpu.memory_space<vmem>>, %arg7: memref<1x128xf32, #tpu.memory_space<vmem>>, %arg8: memref<1x128xf32, #tpu.memory_space<vmem>>, %arg9: memref<128x128xf32, #tpu.memory_space<vmem>>) attributes {dimension_semantics = [#tpu.dimension_semantics<parallel>], iteration_bounds = array<i64: 1>, scalar_prefetch = 0 : i64, scratch_operands = 0 : i64, tpu.core_type = #tpu.core_type<tc>, window_params = [{transform_indices = @transform_0, window_bounds = array<i64: 128, 1>}, {pipeline_mode = #tpu.pipeline_mode<synchronous>, transform_indices = @transform_1, window_bounds = array<i64: 512, 128>}, {transform_indices = @transform_2, window_bounds = array<i64: 128, 128>}, {pipeline_mode = #tpu.pipeline_mode<synchronous>, transform_indices = @transform_3, window_bounds = array<i64: 128, 384>}, {pipeline_mode = #tpu.pipeline_mode<synchronous>, transform_indices = @transform_4, window_bounds = array<i64: 128, 384>}, {pipeline_mode = #tpu.pipeline_mode<synchronous>, transform_indices = @transform_5, window_bounds = array<i64: 1, 256>}, {pipeline_mode = #tpu.pipeline_mode<synchronous>, transform_indices = @transform_6, window_bounds = array<i64: 1, 128>}, {pipeline_mode = #tpu.pipeline_mode<synchronous>, transform_indices = @transform_7, window_bounds = array<i64: 1, 128>}, {transform_indices = @transform_8, window_bounds = array<i64: 128, 128>}]} {
    %c0 = arith.constant 0 : index
    %c0_0 = arith.constant 0 : index
    %0 = vector.load %arg1[%c0, %c0_0] : memref<128x1xi32, #tpu.memory_space<vmem>>, vector<128x1xi32>
    %c0_1 = arith.constant 0 : index
    %c0_2 = arith.constant 0 : index
    %1 = vector.load %arg2[%c0_1, %c0_2] : memref<512x128xf32, #tpu.memory_space<vmem>>, vector<512x128xf32>
    %2 = tpu.iota {dimensions = array<i32: 1>} : vector<128x512xi32>
    %3 = vector.broadcast %0 : vector<128x1xi32> to vector<128x512xi32>
    %4 = arith.cmpi eq, %2, %3 : vector<128x512xi32>
    %5 = arith.extui %4 : vector<128x512xi1> to vector<128x512xi32>
    %6 = arith.sitofp %5 : vector<128x512xi32> to vector<128x512xf32>
    %cst = arith.constant dense<0.000000e+00> : vector<128x128xf32>
    %7 = tpu.matmul %6, %1, %cst {dimension_numbers = #tpu.dot_dimension_numbers<[1], [0], [0], [1], [0, 0, 1, 1], [], []>} : vector<128x512xf32>, vector<512x128xf32>, vector<128x128xf32> -> vector<128x128xf32>
    %c0_3 = arith.constant 0 : index
    %c0_4 = arith.constant 0 : index
    %8 = vector.load %arg3[%c0_3, %c0_4] : memref<128x128xf32, #tpu.memory_space<vmem>>, vector<128x128xf32>
    %c0_5 = arith.constant 0 : index
    %c0_6 = arith.constant 0 : index
    %9 = vector.load %arg4[%c0_5, %c0_6] : memref<128x384xf32, #tpu.memory_space<vmem>>, vector<128x384xf32>
    %cst_7 = arith.constant dense<0.000000e+00> : vector<128x384xf32>
    %10 = tpu.matmul %7, %9, %cst_7 {dimension_numbers = #tpu.dot_dimension_numbers<[1], [0], [0], [1], [0, 0, 1, 1], [], []>} : vector<128x128xf32>, vector<128x384xf32>, vector<128x384xf32> -> vector<128x384xf32>
    %c0_8 = arith.constant 0 : index
    %c0_9 = arith.constant 0 : index
    %11 = vector.load %arg5[%c0_8, %c0_9] : memref<128x384xf32, #tpu.memory_space<vmem>>, vector<128x384xf32>
    %cst_10 = arith.constant dense<0.000000e+00> : vector<128x384xf32>
    %12 = tpu.matmul %8, %11, %cst_10 {dimension_numbers = #tpu.dot_dimension_numbers<[1], [0], [0], [1], [0, 0, 1, 1], [], []>} : vector<128x128xf32>, vector<128x384xf32>, vector<128x384xf32> -> vector<128x384xf32>
    %13 = vector.extract_strided_slice %10 {offsets = [0, 0], sizes = [128, 256], strides = [1, 1]} : vector<128x384xf32> to vector<128x256xf32>
    %14 = vector.extract_strided_slice %12 {offsets = [0, 0], sizes = [128, 256], strides = [1, 1]} : vector<128x384xf32> to vector<128x256xf32>
    %15 = arith.addf %13, %14 : vector<128x256xf32>
    %c0_11 = arith.constant 0 : index
    %c0_12 = arith.constant 0 : index
    %16 = vector.load %arg6[%c0_11, %c0_12] : memref<1x256xf32, #tpu.memory_space<vmem>>, vector<1x256xf32>
    %17 = vector.broadcast %16 : vector<1x256xf32> to vector<128x256xf32>
    %18 = arith.addf %15, %17 : vector<128x256xf32>
    %19 = arith.negf %18 : vector<128x256xf32>
    %20 = math.exp %19 : vector<128x256xf32>
    %cst_13 = arith.constant 1.000000e+00 : f32
    %21 = vector.broadcast %cst_13 : f32 to vector<128x256xf32>
    %22 = arith.addf %21, %20 : vector<128x256xf32>
    %23 = arith.divf %21, %22 : vector<128x256xf32>
    %24 = vector.extract_strided_slice %23 {offsets = [0, 0], sizes = [128, 128], strides = [1, 1]} : vector<128x256xf32> to vector<128x128xf32>
    %25 = vector.extract_strided_slice %23 {offsets = [0, 128], sizes = [128, 128], strides = [1, 1]} : vector<128x256xf32> to vector<128x128xf32>
    %26 = vector.extract_strided_slice %10 {offsets = [0, 256], sizes = [128, 128], strides = [1, 1]} : vector<128x384xf32> to vector<128x128xf32>
    %c0_14 = arith.constant 0 : index
    %c0_15 = arith.constant 0 : index
    %27 = vector.load %arg7[%c0_14, %c0_15] : memref<1x128xf32, #tpu.memory_space<vmem>>, vector<1x128xf32>
    %28 = vector.broadcast %27 : vector<1x128xf32> to vector<128x128xf32>
    %29 = arith.addf %26, %28 : vector<128x128xf32>
    %30 = vector.extract_strided_slice %12 {offsets = [0, 256], sizes = [128, 128], strides = [1, 1]} : vector<128x384xf32> to vector<128x128xf32>
    %c0_16 = arith.constant 0 : index
    %c0_17 = arith.constant 0 : index
    %31 = vector.load %arg8[%c0_16, %c0_17] : memref<1x128xf32, #tpu.memory_space<vmem>>, vector<1x128xf32>
    %32 = vector.broadcast %31 : vector<1x128xf32> to vector<128x128xf32>
    %33 = arith.addf %30, %32 : vector<128x128xf32>
    %34 = arith.mulf %24, %33 : vector<128x128xf32>
    %35 = arith.addf %29, %34 : vector<128x128xf32>
    %36 = math.tanh %35 : vector<128x128xf32>
    %37 = arith.subf %8, %36 : vector<128x128xf32>
    %38 = arith.mulf %25, %37 : vector<128x128xf32>
    %39 = arith.addf %36, %38 : vector<128x128xf32>
    %c0_18 = arith.constant 0 : index
    %c0_19 = arith.constant 0 : index
    %40 = vector.load %arg9[%c0_18, %c0_19] : memref<128x128xf32, #tpu.memory_space<vmem>>, vector<128x128xf32>
    tpu.vector_store %arg9[%c0_18, %c0_19], %39 {strides = array<i32>} : memref<128x128xf32, #tpu.memory_space<vmem>>, vector<128x128xf32>,
    return
  }
  func.func @transform_0(%arg0: i32) -> (i32, i32) {
    %c0_i32 = arith.constant 0 : i32
    %c0_i32_0 = arith.constant 0 : i32
    return %arg0, %c0_i32 : i32, i32
  }
  func.func @transform_1(%arg0: i32) -> (i32, i32) {
    %c0_i32 = arith.constant 0 : i32
    %c0_i32_0 = arith.constant 0 : i32
    %c0_i32_1 = arith.constant 0 : i32
    return %c0_i32, %c0_i32_0 : i32, i32
  }
  func.func @transform_2(%arg0: i32) -> (i32, i32) {
    %c0_i32 = arith.constant 0 : i32
    %c0_i32_0 = arith.constant 0 : i32
    return %arg0, %c0_i32 : i32, i32
  }
  func.func @transform_3(%arg0: i32) -> (i32, i32) {
    %c0_i32 = arith.constant 0 : i32
    %c0_i32_0 = arith.constant 0 : i32
    %c0_i32_1 = arith.constant 0 : i32
    return %c0_i32, %c0_i32_0 : i32, i32
  }
  func.func @transform_4(%arg0: i32) -> (i32, i32) {
    %c0_i32 = arith.constant 0 : i32
    %c0_i32_0 = arith.constant 0 : i32
    %c0_i32_1 = arith.constant 0 : i32
    return %c0_i32, %c0_i32_0 : i32, i32
  }
  func.func @transform_5(%arg0: i32) -> (i32, i32) {
    %c0_i32 = arith.constant 0 : i32
    %c0_i32_0 = arith.constant 0 : i32
    %c0_i32_1 = arith.constant 0 : i32
    return %c0_i32, %c0_i32_0 : i32, i32
  }
  func.func @transform_6(%arg0: i32) -> (i32, i32) {
    %c0_i32 = arith.constant 0 : i32
    %c0_i32_0 = arith.constant 0 : i32
    %c0_i32_1 = arith.constant 0 : i32
    return %c0_i32, %c0_i32_0 : i32, i32
  }
  func.func @transform_7(%arg0: i32) -> (i32, i32) {
    %c0_i32 = arith.constant 0 : i32
    %c0_i32_0 = arith.constant 0 : i32
    %c0_i32_1 = arith.constant 0 : i32
    return %c0_i32, %c0_i32_0 : i32, i32
  }
  func.func @transform_8(%arg0: i32) -> (i32, i32) {
    %c0_i32 = arith.constant 0 : i32
    %c0_i32_0 = arith.constant 0 : i32
    return %arg0, %c0_i32 : i32, i32
  }
}

</mosaic_0001>

<llo_original>
// kernel: tpu_custom_call.1
$region0: #{tpu_custom_call.1}
  #allocation0 [shape = 'u32[]', space=smem, size = 0x4, offset = 0x4, fixed_abs, tag = 'smem constant byte address 0x4 - core index']
  #allocation1 [shape = 'u32[144,128]{1,0:T(1,128)}', space=vmem, size = 0x12000, scoped, tag = 'internal scratch']
  %s0 = inlined_call_operand.vmem [shape: s32[128,1], index: 0, kind: input, shape index: {}]
  %s1 = inlined_call_operand.hbm [shape: f32[512,128], index: 1, kind: input, shape index: {}]
  %s2 = inlined_call_operand.hbm [shape: f32[128,128], index: 2, kind: input, shape index: {}, may-alias: {2,8}]
  %s3 = inlined_call_operand.vmem [shape: f32[128,384], index: 3, kind: input, shape index: {}]
  %s4 = inlined_call_operand.hbm [shape: f32[128,384], index: 4, kind: input, shape index: {}]
  %s5 = inlined_call_operand.vmem [shape: f32[1,256], index: 5, kind: input, shape index: {}]
  %s6 = inlined_call_operand.vmem [shape: f32[1,128], index: 6, kind: input, shape index: {}]
  %s7 = inlined_call_operand.vmem [shape: f32[1,128], index: 7, kind: input, shape index: {}]
  %s8 = inlined_call_operand.hbm [shape: f32[128,128], index: 8, kind: output, shape index: {}, may-alias: {2,8}]
  %s9 = sld [smem:[#allocation0]]
  $region54: #{tpu_custom_call.1} parent=0
    _
  %s11 = ssub.s32 1, %s9
  %s12 = scalar_select 0, %s11, %s9
  $region1: #{tpu_custom_call.1} parent=0
    #allocation2 [shape = 'u8[262144]{0}', space=vmem, size = 0x40000, scoped, tag = 'input window, operand 1, single buffered']
    #allocation3 [shape = 's32[1]{0}', space=sflag, size = 0x4, scoped, tag = 'scoped memory for tpu_custom_call.1']
    #allocation4 [shape = 's32[1]{0}', space=sflag, size = 0x4, scoped, tag = 'scoped memory for tpu_custom_call.1']
    #allocation5 [shape = 'u8[65536]{0}', space=vmem, size = 0x10000, scoped, tag = 'input window, operand 2, single buffered']
    #allocation6 [shape = 's32[1]{0}', space=sflag, size = 0x4, scoped, tag = 'scoped memory for tpu_custom_call.1']
    #allocation7 [shape = 'u8[196608]{0}', space=vmem, size = 0x30000, scoped, tag = 'input window, operand 4, single buffered']
    #allocation8 [shape = 'u8[65536]{0}', space=vmem, size = 0x10000, scoped, tag = 'output window, operand 0, single buffered']
    %13 = vsyncpa [#allocation3], 0
    %14 = vsyncpa [#allocation6], 0
    %15 = vsyncpa [#allocation4], 0
    // Predicated region
    $region2: #{tpu_custom_call.1} parent=1 // pred_check
      _
    $region3: #{tpu_custom_call.1} parent=1 // pred_check_branch
      %17 = sbr.rel (0) target = $region5
    $region4: #{tpu_custom_call.1} parent=1 // pred_region
      _
    $region5: #{tpu_custom_call.1} parent=1 // pred_fallthru
      _
    // Predicated region
    $region6: #{tpu_custom_call.1} parent=1 // pred_check
      _
    $region7: #{tpu_custom_call.1} parent=1 // pred_check_branch
      %19 = sbr.rel (0) target = $region9
    $region8: #{tpu_custom_call.1} parent=1 // pred_region
      %s21 = ssub.s32 8192, 8192
      %22 = vsyncadd [#allocation3], %s21
      %s23 = sshll.u32 [#allocation2], 4
      %s24 = int_to_ptr.vmem [resolvable:$true] %s23
      %29 = dma.hbm_to_vmem [thread:$0]  %s1, 8192, %s24, [#allocation3], 128, 128, 8
    $region9: #{tpu_custom_call.1} parent=1 // pred_fallthru
      _
    // Predicated region
    $region10: #{tpu_custom_call.1} parent=1 // pred_check
      _
    $region11: #{tpu_custom_call.1} parent=1 // pred_check_branch
      %31 = sbr.rel (0) target = $region13
    $region12: #{tpu_custom_call.1} parent=1 // pred_region
      %s33 = ssub.s32 2048, 2048
      %34 = vsyncadd [#allocation6], %s33
      %s35 = sshll.u32 [#allocation5], 4
      %s36 = int_to_ptr.vmem [resolvable:$true] %s35
      %41 = dma.hbm_to_vmem [thread:$0]  %s2, 2048, %s36, [#allocation6], 128, 128, 8
    $region13: #{tpu_custom_call.1} parent=1 // pred_fallthru
      _
    // Predicated region
    $region14: #{tpu_custom_call.1} parent=1 // pred_check
      _
    $region15: #{tpu_custom_call.1} parent=1 // pred_check_branch
      %43 = sbr.rel (0) target = $region17
    $region16: #{tpu_custom_call.1} parent=1 // pred_region
      _
    $region17: #{tpu_custom_call.1} parent=1 // pred_fallthru
      _
    // Predicated region
    $region18: #{tpu_custom_call.1} parent=1 // pred_check
      _
    $region19: #{tpu_custom_call.1} parent=1 // pred_check_branch
      %45 = sbr.rel (0) target = $region21
    $region20: #{tpu_custom_call.1} parent=1 // pred_region
      %s47 = ssub.s32 6144, 6144
      %48 = vsyncadd [#allocation6], %s47
      %s49 = sshll.u32 [#allocation7], 4
      %s50 = int_to_ptr.vmem [resolvable:$true] %s49
      %55 = dma.hbm_to_vmem [thread:$0]  %s4, 6144, %s50, [#allocation6], 384, 384, 24
    $region21: #{tpu_custom_call.1} parent=1 // pred_fallthru
      _
    // Predicated region
    $region22: #{tpu_custom_call.1} parent=1 // pred_check
      _
    $region23: #{tpu_custom_call.1} parent=1 // pred_check_branch
      %57 = sbr.rel (0) target = $region25
    $region24: #{tpu_custom_call.1} parent=1 // pred_region
      _
    $region25: #{tpu_custom_call.1} parent=1 // pred_fallthru
      _
    // Predicated region
    $region26: #{tpu_custom_call.1} parent=1 // pred_check
      _
    $region27: #{tpu_custom_call.1} parent=1 // pred_check_branch
      %59 = sbr.rel (0) target = $region29
    $region28: #{tpu_custom_call.1} parent=1 // pred_region
      _
    $region29: #{tpu_custom_call.1} parent=1 // pred_fallthru
      _
    // Predicated region
    $region30: #{tpu_custom_call.1} parent=1 // pred_check
      _
    $region31: #{tpu_custom_call.1} parent=1 // pred_check_branch
      %61 = sbr.rel (0) target = $region33
    $region32: #{tpu_custom_call.1} parent=1 // pred_region
      _
    $region33: #{tpu_custom_call.1} parent=1 // pred_fallthru
      _
    // Predicated region
    $region34: #{tpu_custom_call.1} parent=1 // pred_check
      _
    $region35: #{tpu_custom_call.1} parent=1 // pred_check_branch
      %63 = sbr.rel (0) target = $region37
    $region36: #{tpu_custom_call.1} parent=1 // pred_region
      %64 = dma.done [#allocation3], 8192
    $region37: #{tpu_custom_call.1} parent=1 // pred_fallthru
      _
    // Predicated region
    $region38: #{tpu_custom_call.1} parent=1 // pred_check
      _
    $region39: #{tpu_custom_call.1} parent=1 // pred_check_branch
      %66 = sbr.rel (0) target = $region41
    $region40: #{tpu_custom_call.1} parent=1 // pred_region
      %67 = dma.done [#allocation6], 2048
    $region41: #{tpu_custom_call.1} parent=1 // pred_fallthru
      _
    // Predicated region
    $region42: #{tpu_custom_call.1} parent=1 // pred_check
      _
    $region43: #{tpu_custom_call.1} parent=1 // pred_check_branch
      %69 = sbr.rel (0) target = $region45
    $region44: #{tpu_custom_call.1} parent=1 // pred_region
      %70 = dma.done [#allocation6], 6144
    $region45: #{tpu_custom_call.1} parent=1 // pred_fallthru
      _
    %v71 = vld [vmem:[%s0] sm:$0xff]
    %v72 = vld [vmem:[%s0 + $0x8] sm:$0xff]
    %v73 = vld [vmem:[%s0 + $0x10] sm:$0xff]
    %v74 = vld [vmem:[%s0 + $0x18] sm:$0xff]
    %v75 = vld [vmem:[%s0 + $0x20] sm:$0xff]
    %v76 = vld [vmem:[%s0 + $0x28] sm:$0xff]
    %v77 = vld [vmem:[%s0 + $0x30] sm:$0xff]
    %v78 = vld [vmem:[%s0 + $0x38] sm:$0xff]
    %v79 = vld [vmem:[%s0 + $0x40] sm:$0xff]
    %v80 = vld [vmem:[%s0 + $0x48] sm:$0xff]
    %v81 = vld [vmem:[%s0 + $0x50] sm:$0xff]
    %v82 = vld [vmem:[%s0 + $0x58] sm:$0xff]
    %v83 = vld [vmem:[%s0 + $0x60] sm:$0xff]
    %v84 = vld [vmem:[%s0 + $0x68] sm:$0xff]
    %v85 = vld [vmem:[%s0 + $0x70] sm:$0xff]
    %v86 = vld [vmem:[%s0 + $0x78] sm:$0xff]
    %v87 = vld [vmem:[#allocation2] sm:$0xff]
    %v88 = vld [vmem:[#allocation2 + $0x8] sm:$0xff]
    %v89 = vld [vmem:[#allocation2 + $0x10] sm:$0xff]
    %v90 = vld [vmem:[#allocation2 + $0x18] sm:$0xff]
    %v91 = vld [vmem:[#allocation2 + $0x20] sm:$0xff]
    %v92 = vld [vmem:[#allocation2 + $0x28] sm:$0xff]
    %v93 = vld [vmem:[#allocation2 + $0x30] sm:$0xff]
    %v94 = vld [vmem:[#allocation2 + $0x38] sm:$0xff]
    %v95 = vld [vmem:[#allocation2 + $0x40] sm:$0xff]
    %v96 = vld [vmem:[#allocation2 + $0x48] sm:$0xff]
    %v97 = vld [vmem:[#allocation2 + $0x50] sm:$0xff]
    %v98 = vld [vmem:[#allocation2 + $0x58] sm:$0xff]
    %v99 = vld [vmem:[#allocation2 + $0x60] sm:$0xff]
    %v100 = vld [vmem:[#allocation2 + $0x68] sm:$0xff]
    %v101 = vld [vmem:[#allocation2 + $0x70] sm:$0xff]
    %v102 = vld [vmem:[#allocation2 + $0x78] sm:$0xff]
    %v103 = vld [vmem:[#allocation2 + $0x80] sm:$0xff]
    %v104 = vld [vmem:[#allocation2 + $0x88] sm:$0xff]
    %v105 = vld [vmem:[#allocation2 + $0x90] sm:$0xff]
    %v106 = vld [vmem:[#allocation2 + $0x98] sm:$0xff]
    %v107 = vld [vmem:[#allocation2 + $0xa0] sm:$0xff]
    %v108 = vld [vmem:[#allocation2 + $0xa8] sm:$0xff]
    %v109 = vld [vmem:[#allocation2 + $0xb0] sm:$0xff]
    %v110 = vld [vmem:[#allocation2 + $0xb8] sm:$0xff]
    %v111 = vld [vmem:[#allocation2 + $0xc0] sm:$0xff]
    %v112 = vld [vmem:[#allocation2 + $0xc8] sm:$0xff]
    %v113 = vld [vmem:[#allocation2 + $0xd0] sm:$0xff]
    %v114 = vld [vmem:[#allocation2 + $0xd8] sm:$0xff]
    %v115 = vld [vmem:[#allocation2 + $0xe0] sm:$0xff]
    %v116 = vld [vmem:[#allocation2 + $0xe8] sm:$0xff]
    %v117 = vld [vmem:[#allocation2 + $0xf0] sm:$0xff]
    %v118 = vld [vmem:[#allocation2 + $0xf8] sm:$0xff]
    %v119 = vld [vmem:[#allocation2 + $0x100] sm:$0xff]
    %v120 = vld [vmem:[#allocation2 + $0x108] sm:$0xff]
    %v121 = vld [vmem:[#allocation2 + $0x110] sm:$0xff]
    %v122 = vld [vmem:[#allocation2 + $0x118] sm:$0xff]
    %v123 = vld [vmem:[#allocation2 + $0x120] sm:$0xff]
    %v124 = vld [vmem:[#allocation2 + $0x128] sm:$0xff]
    %v125 = vld [vmem:[#allocation2 + $0x130] sm:$0xff]
    %v126 = vld [vmem:[#allocation2 + $0x138] sm:$0xff]
    %v127 = vld [vmem:[#allocation2 + $0x140] sm:$0xff]
    %v128 = vld [vmem:[#allocation2 + $0x148] sm:$0xff]
    %v129 = vld [vmem:[#allocation2 + $0x150] sm:$0xff]
    %v130 = vld [vmem:[#allocation2 + $0x158] sm:$0xff]
    %v131 = vld [vmem:[#allocation2 + $0x160] sm:$0xff]
    %v132 = vld [vmem:[#allocation2 + $0x168] sm:$0xff]
    %v133 = vld [vmem:[#allocation2 + $0x170] sm:$0xff]
    %v134 = vld [vmem:[#allocation2 + $0x178] sm:$0xff]
    %v135 = vld [vmem:[#allocation2 + $0x180] sm:$0xff]
    %v136 = vld [vmem:[#allocation2 + $0x188] sm:$0xff]
    %v137 = vld [vmem:[#allocation2 + $0x190] sm:$0xff]
    %v138 = vld [vmem:[#allocation2 + $0x198] sm:$0xff]
    %v139 = vld [vmem:[#allocation2 + $0x1a0] sm:$0xff]
    %v140 = vld [vmem:[#allocation2 + $0x1a8] sm:$0xff]
    %v141 = vld [vmem:[#allocation2 + $0x1b0] sm:$0xff]
    %v142 = vld [vmem:[#allocation2 + $0x1b8] sm:$0xff]
    %v143 = vld [vmem:[#allocation2 + $0x1c0] sm:$0xff]
    %v144 = vld [vmem:[#allocation2 + $0x1c8] sm:$0xff]
    %v145 = vld [vmem:[#allocation2 + $0x1d0] sm:$0xff]
    %v146 = vld [vmem:[#allocation2 + $0x1d8] sm:$0xff]
    %v147 = vld [vmem:[#allocation2 + $0x1e0] sm:$0xff]
    %v148 = vld [vmem:[#allocation2 + $0x1e8] sm:$0xff]
    %v149 = vld [vmem:[#allocation2 + $0x1f0] sm:$0xff]
    %v150 = vld [vmem:[#allocation2 + $0x1f8] sm:$0xff]
    %v151 = vlaneseq
    %v152 = vand.u32 %v151, 127
    %v153 = vadd.s32 %v152, 128
    %v154 = vadd.s32 %v152, 256
    %v155 = vadd.s32 %v152, 384
    %156 = vset.pattern.permute.xlu0 0
    %157 = vperm.xlu0 %156, %v71
    %v158 = vpop.permute.xlu0 %157
    %159 = vset.pattern.permute.xlu0 0
    %160 = vperm.xlu0 %159, %v72
    %v161 = vpop.permute.xlu0 %160
    %162 = vset.pattern.permute.xlu0 0
    %163 = vperm.xlu0 %162, %v73
    %v164 = vpop.permute.xlu0 %163
    %165 = vset.pattern.permute.xlu0 0
    %166 = vperm.xlu0 %165, %v74
    %v167 = vpop.permute.xlu0 %166
    %168 = vset.pattern.permute.xlu0 0
    %169 = vperm.xlu0 %168, %v75
    %v170 = vpop.permute.xlu0 %169
    %171 = vset.pattern.permute.xlu0 0
    %172 = vperm.xlu0 %171, %v76
    %v173 = vpop.permute.xlu0 %172
    %174 = vset.pattern.permute.xlu0 0
    %175 = vperm.xlu0 %174, %v77
    %v176 = vpop.permute.xlu0 %175
    %177 = vset.pattern.permute.xlu0 0
    %178 = vperm.xlu0 %177, %v78
    %v179 = vpop.permute.xlu0 %178
    %180 = vset.pattern.permute.xlu0 0
    %181 = vperm.xlu0 %180, %v79
    %v182 = vpop.permute.xlu0 %181
    %183 = vset.pattern.permute.xlu0 0
    %184 = vperm.xlu0 %183, %v80
    %v185 = vpop.permute.xlu0 %184
    %186 = vset.pattern.permute.xlu0 0
    %187 = vperm.xlu0 %186, %v81
    %v188 = vpop.permute.xlu0 %187
    %189 = vset.pattern.permute.xlu0 0
    %190 = vperm.xlu0 %189, %v82
    %v191 = vpop.permute.xlu0 %190
    %192 = vset.pattern.permute.xlu0 0
    %193 = vperm.xlu0 %192, %v83
    %v194 = vpop.permute.xlu0 %193
    %195 = vset.pattern.permute.xlu0 0
    %196 = vperm.xlu0 %195, %v84
    %v197 = vpop.permute.xlu0 %196
    %198 = vset.pattern.permute.xlu0 0
    %199 = vperm.xlu0 %198, %v85
    %v200 = vpop.permute.xlu0 %199
    %201 = vset.pattern.permute.xlu0 0
    %202 = vperm.xlu0 %201, %v86
    %v203 = vpop.permute.xlu0 %202
    %vm204 = vcmp.eq.s32.totalorder %v152, %v158
    %vm205 = vcmp.eq.s32.totalorder %v153, %v158
    %vm206 = vcmp.eq.s32.totalorder %v154, %v158
    %vm207 = vcmp.eq.s32.totalorder %v155, %v158
    %vm208 = vcmp.eq.s32.totalorder %v152, %v161
    %vm209 = vcmp.eq.s32.totalorder %v153, %v161
    %vm210 = vcmp.eq.s32.totalorder %v154, %v161
    %vm211 = vcmp.eq.s32.totalorder %v155, %v161
    %vm212 = vcmp.eq.s32.totalorder %v152, %v164
    %vm213 = vcmp.eq.s32.totalorder %v153, %v164
    %vm214 = vcmp.eq.s32.totalorder %v154, %v164
    %vm215 = vcmp.eq.s32.totalorder %v155, %v164
    %vm216 = vcmp.eq.s32.totalorder %v152, %v167
    %vm217 = vcmp.eq.s32.totalorder %v153, %v167
    %vm218 = vcmp.eq.s32.totalorder %v154, %v167
    %vm219 = vcmp.eq.s32.totalorder %v155, %v167
    %vm220 = vcmp.eq.s32.totalorder %v152, %v170
    %vm221 = vcmp.eq.s32.totalorder %v153, %v170
    %vm222 = vcmp.eq.s32.totalorder %v154, %v170
    %vm223 = vcmp.eq.s32.totalorder %v155, %v170
    %vm224 = vcmp.eq.s32.totalorder %v152, %v173
    %vm225 = vcmp.eq.s32.totalorder %v153, %v173
    %vm226 = vcmp.eq.s32.totalorder %v154, %v173
    %vm227 = vcmp.eq.s32.totalorder %v155, %v173
    %vm228 = vcmp.eq.s32.totalorder %v152, %v176
    %vm229 = vcmp.eq.s32.totalorder %v153, %v176
    %vm230 = vcmp.eq.s32.totalorder %v154, %v176
    %vm231 = vcmp.eq.s32.totalorder %v155, %v176
    %vm232 = vcmp.eq.s32.totalorder %v152, %v179
    %vm233 = vcmp.eq.s32.totalorder %v153, %v179
    %vm234 = vcmp.eq.s32.totalorder %v154, %v179
    %vm235 = vcmp.eq.s32.totalorder %v155, %v179
    %vm236 = vcmp.eq.s32.totalorder %v152, %v182
    %vm237 = vcmp.eq.s32.totalorder %v153, %v182
    %vm238 = vcmp.eq.s32.totalorder %v154, %v182
    %vm239 = vcmp.eq.s32.totalorder %v155, %v182
    %vm240 = vcmp.eq.s32.totalorder %v152, %v185
    %vm241 = vcmp.eq.s32.totalorder %v153, %v185
    %vm242 = vcmp.eq.s32.totalorder %v154, %v185
    %vm243 = vcmp.eq.s32.totalorder %v155, %v185
    %vm244 = vcmp.eq.s32.totalorder %v152, %v188
    %vm245 = vcmp.eq.s32.totalorder %v153, %v188
    %vm246 = vcmp.eq.s32.totalorder %v154, %v188
    %vm247 = vcmp.eq.s32.totalorder %v155, %v188
    %vm248 = vcmp.eq.s32.totalorder %v152, %v191
    %vm249 = vcmp.eq.s32.totalorder %v153, %v191
    %vm250 = vcmp.eq.s32.totalorder %v154, %v191
    %vm251 = vcmp.eq.s32.totalorder %v155, %v191
    %vm252 = vcmp.eq.s32.totalorder %v152, %v194
    %vm253 = vcmp.eq.s32.totalorder %v153, %v194
    %vm254 = vcmp.eq.s32.totalorder %v154, %v194
    %vm255 = vcmp.eq.s32.totalorder %v155, %v194
    %vm256 = vcmp.eq.s32.totalorder %v152, %v197
    %vm257 = vcmp.eq.s32.totalorder %v153, %v197
    %vm258 = vcmp.eq.s32.totalorder %v154, %v197
    %vm259 = vcmp.eq.s32.totalorder %v155, %v197
    %vm260 = vcmp.eq.s32.totalorder %v152, %v200
    %vm261 = vcmp.eq.s32.totalorder %v153, %v200
    %vm262 = vcmp.eq.s32.totalorder %v154, %v200
    %vm263 = vcmp.eq.s32.totalorder %v155, %v200
    %vm264 = vcmp.eq.s32.totalorder %v152, %v203
    %vm265 = vcmp.eq.s32.totalorder %v153, %v203
    %vm266 = vcmp.eq.s32.totalorder %v154, %v203
    %vm267 = vcmp.eq.s32.totalorder %v155, %v203
    %v268 = vsel %vm204, 1, 0
    %v269 = vsel %vm205, 1, 0
    %v270 = vsel %vm206, 1, 0
    %v271 = vsel %vm207, 1, 0
    %v272 = vsel %vm208, 1, 0
    %v273 = vsel %vm209, 1, 0
    %v274 = vsel %vm210, 1, 0
    %v275 = vsel %vm211, 1, 0
    %v276 = vsel %vm212, 1, 0
    %v277 = vsel %vm213, 1, 0
    %v278 = vsel %vm214, 1, 0
    %v279 = vsel %vm215, 1, 0
    %v280 = vsel %vm216, 1, 0
    %v281 = vsel %vm217, 1, 0
    %v282 = vsel %vm218, 1, 0
    %v283 = vsel %vm219, 1, 0
    %v284 = vsel %vm220, 1, 0
    %v285 = vsel %vm221, 1, 0
    %v286 = vsel %vm222, 1, 0
    %v287 = vsel %vm223, 1, 0
    %v288 = vsel %vm224, 1, 0
    %v289 = vsel %vm225, 1, 0
    %v290 = vsel %vm226, 1, 0
    %v291 = vsel %vm227, 1, 0
    %v292 = vsel %vm228, 1, 0
    %v293 = vsel %vm229, 1, 0
    %v294 = vsel %vm230, 1, 0
    %v295 = vsel %vm231, 1, 0
    %v296 = vsel %vm232, 1, 0
    %v297 = vsel %vm233, 1, 0
    %v298 = vsel %vm234, 1, 0
    %v299 = vsel %vm235, 1, 0
    %v300 = vsel %vm236, 1, 0
    %v301 = vsel %vm237, 1, 0
    %v302 = vsel %vm238, 1, 0
    %v303 = vsel %vm239, 1, 0
    %v304 = vsel %vm240, 1, 0
    %v305 = vsel %vm241, 1, 0
    %v306 = vsel %vm242, 1, 0
    %v307 = vsel %vm243, 1, 0
    %v308 = vsel %vm244, 1, 0
    %v309 = vsel %vm245, 1, 0
    %v310 = vsel %vm246, 1, 0
    %v311 = vsel %vm247, 1, 0
    %v312 = vsel %vm248, 1, 0
    %v313 = vsel %vm249, 1, 0
    %v314 = vsel %vm250, 1, 0
    %v315 = vsel %vm251, 1, 0
    %v316 = vsel %vm252, 1, 0
    %v317 = vsel %vm253, 1, 0
    %v318 = vsel %vm254, 1, 0
    %v319 = vsel %vm255, 1, 0
    %v320 = vsel %vm256, 1, 0
    %v321 = vsel %vm257, 1, 0
    %v322 = vsel %vm258, 1, 0
    %v323 = vsel %vm259, 1, 0
    %v324 = vsel %vm260, 1, 0
    %v325 = vsel %vm261, 1, 0
    %v326 = vsel %vm262, 1, 0
    %v327 = vsel %vm263, 1, 0
    %v328 = vsel %vm264, 1, 0
    %v329 = vsel %vm265, 1, 0
    %v330 = vsel %vm266, 1, 0
    %v331 = vsel %vm267, 1, 0
    %v332 = vcvt.s32.f32 %v268
    %v333 = vcvt.s32.f32 %v269
    %v334 = vcvt.s32.f32 %v270
    %v335 = vcvt.s32.f32 %v271
    %v336 = vcvt.s32.f32 %v272
    %v337 = vcvt.s32.f32 %v273
    %v338 = vcvt.s32.f32 %v274
    %v339 = vcvt.s32.f32 %v275
    %v340 = vcvt.s32.f32 %v276
    %v341 = vcvt.s32.f32 %v277
    %v342 = vcvt.s32.f32 %v278
    %v343 = vcvt.s32.f32 %v279
    %v344 = vcvt.s32.f32 %v280
    %v345 = vcvt.s32.f32 %v281
    %v346 = vcvt.s32.f32 %v282
    %v347 = vcvt.s32.f32 %v283
    %v348 = vcvt.s32.f32 %v284
    %v349 = vcvt.s32.f32 %v285
    %v350 = vcvt.s32.f32 %v286
    %v351 = vcvt.s32.f32 %v287
    %v352 = vcvt.s32.f32 %v288
    %v353 = vcvt.s32.f32 %v289
    %v354 = vcvt.s32.f32 %v290
    %v355 = vcvt.s32.f32 %v291
    %v356 = vcvt.s32.f32 %v292
    %v357 = vcvt.s32.f32 %v293
    %v358 = vcvt.s32.f32 %v294
    %v359 = vcvt.s32.f32 %v295
    %v360 = vcvt.s32.f32 %v296
    %v361 = vcvt.s32.f32 %v297
    %v362 = vcvt.s32.f32 %v298
    %v363 = vcvt.s32.f32 %v299
    %v364 = vcvt.s32.f32 %v300
    %v365 = vcvt.s32.f32 %v301
    %v366 = vcvt.s32.f32 %v302
    %v367 = vcvt.s32.f32 %v303
    %v368 = vcvt.s32.f32 %v304
    %v369 = vcvt.s32.f32 %v305
    %v370 = vcvt.s32.f32 %v306
    %v371 = vcvt.s32.f32 %v307
    %v372 = vcvt.s32.f32 %v308
    %v373 = vcvt.s32.f32 %v309
    %v374 = vcvt.s32.f32 %v310
    %v375 = vcvt.s32.f32 %v311
    %v376 = vcvt.s32.f32 %v312
    %v377 = vcvt.s32.f32 %v313
    %v378 = vcvt.s32.f32 %v314
    %v379 = vcvt.s32.f32 %v315
    %v380 = vcvt.s32.f32 %v316
    %v381 = vcvt.s32.f32 %v317
    %v382 = vcvt.s32.f32 %v318
    %v383 = vcvt.s32.f32 %v319
    %v384 = vcvt.s32.f32 %v320
    %v385 = vcvt.s32.f32 %v321
    %v386 = vcvt.s32.f32 %v322
    %v387 = vcvt.s32.f32 %v323
    %v388 = vcvt.s32.f32 %v324
    %v389 = vcvt.s32.f32 %v325
    %v390 = vcvt.s32.f32 %v326
    %v391 = vcvt.s32.f32 %v327
    %v392 = vcvt.s32.f32 %v328
    %v393 = vcvt.s32.f32 %v329
    %v394 = vcvt.s32.f32 %v330
    %v395 = vcvt.s32.f32 %v331
    %396 = vmatprep.subr.mxu0 0.0
    %397 = vmatpush1.msra.mxu0 %v102
    %398 = vmatprep.subr.mxu0 0.0
    %399 = vmatpush1.msra.mxu0 %v101
    %400 = vmatprep.subr.mxu0 0.0
    %401 = vmatpush1.msra.mxu0 %v100
    %402 = vmatprep.subr.mxu0 0.0
    %403 = vmatpush1.msra.mxu0 %v99
    %404 = vmatprep.subr.mxu0 0.0
    %405 = vmatpush1.msra.mxu0 %v98
    %406 = vmatprep.subr.mxu0 0.0
    %407 = vmatpush1.msra.mxu0 %v97
    %408 = vmatprep.subr.mxu0 0.0
    %409 = vmatpush1.msra.mxu0 %v96
    %410 = vmatprep.subr.mxu0 0.0
    %411 = vmatpush1.msra.mxu0 %v95
    %412 = vmatprep.subr.mxu0 0.0
    %413 = vmatpush1.msra.mxu0 %v94
    %414 = vmatprep.subr.mxu0 0.0
    %415 = vmatpush1.msra.mxu0 %v93
    %416 = vmatprep.subr.mxu0 0.0
    %417 = vmatpush1.msra.mxu0 %v92
    %418 = vmatprep.subr.mxu0 0.0
    %419 = vmatpush1.msra.mxu0 %v91
    %420 = vmatprep.subr.mxu0 0.0
    %421 = vmatpush1.msra.mxu0 %v90
    %422 = vmatprep.subr.mxu0 0.0
    %423 = vmatpush1.msra.mxu0 %v89
    %424 = vmatprep.subr.mxu0 0.0
    %425 = vmatpush1.msra.mxu0 %v88
    %426 = vmatprep.subr.mxu0 0.0
    %427 = vmatpush1.msra.mxu0 %v87
    %428 = vmatprep.subr.mxu0 0.0
    %429 = vmatpush2.msra.mxu0 %v118
    %430 = vmatprep.subr.mxu0 0.0
    %431 = vmatpush2.msra.mxu0 %v117
    %432 = vmatprep.subr.mxu0 0.0
    %433 = vmatpush2.msra.mxu0 %v116
    %434 = vmatprep.subr.mxu0 0.0
    %435 = vmatpush2.msra.mxu0 %v115
    %436 = vmatprep.subr.mxu0 0.0
    %437 = vmatpush2.msra.mxu0 %v114
    %438 = vmatprep.subr.mxu0 0.0
    %439 = vmatpush2.msra.mxu0 %v113
    %440 = vmatprep.subr.mxu0 0.0
    %441 = vmatpush2.msra.mxu0 %v112
    %442 = vmatprep.subr.mxu0 0.0
    %443 = vmatpush2.msra.mxu0 %v111
    %444 = vmatprep.subr.mxu0 0.0
    %445 = vmatpush2.msra.mxu0 %v110
    %446 = vmatprep.subr.mxu0 0.0
    %447 = vmatpush2.msra.mxu0 %v109
    %448 = vmatprep.subr.mxu0 0.0
    %449 = vmatpush2.msra.mxu0 %v108
    %450 = vmatprep.subr.mxu0 0.0
    %451 = vmatpush2.msra.mxu0 %v107
    %452 = vmatprep.subr.mxu0 0.0
    %453 = vmatpush2.msra.mxu0 %v106
    %454 = vmatprep.subr.mxu0 0.0
    %455 = vmatpush2.msra.mxu0 %v105
    %456 = vmatprep.subr.mxu0 0.0
    %457 = vmatpush2.msra.mxu0 %v104
    %458 = vmatprep.subr.mxu0 0.0
    %459 = vmatpush2.msra.mxu0 %v103
    %460 = vmatprep.mubr.f32.mxu0 %v333
    %461 = vmatmul.mubr.f32.gmra.mxu0 %v332
    %v462 = vpop.f32.mrf.mxu0
    %v463 = vadd.f32 0.0, %v462
    %v464 = vpop.f32.mrf.mxu0
    %465 = vmatprep.mubr.f32.mxu0 %v337
    %466 = vmatmul.mubr.f32.gmra.mxu0 %v336
    %v467 = vpop.f32.mrf.mxu0
    %v468 = vadd.f32 0.0, %v467
    %v469 = vpop.f32.mrf.mxu0
    %470 = vmatprep.mubr.f32.mxu0 %v341
    %471 = vmatmul.mubr.f32.gmra.mxu0 %v340
    %v472 = vpop.f32.mrf.mxu0
    %v473 = vadd.f32 0.0, %v472
    %v474 = vpop.f32.mrf.mxu0
    %475 = vmatprep.mubr.f32.mxu0 %v345
    %476 = vmatmul.mubr.f32.gmra.mxu0 %v344
    %v477 = vpop.f32.mrf.mxu0
    %v478 = vadd.f32 0.0, %v477
    %v479 = vpop.f32.mrf.mxu0
    %480 = vmatprep.mubr.f32.mxu0 %v349
    %481 = vmatmul.mubr.f32.gmra.mxu0 %v348
    %v482 = vpop.f32.mrf.mxu0
    %v483 = vadd.f32 0.0, %v482
    %v484 = vpop.f32.mrf.mxu0
    %485 = vmatprep.mubr.f32.mxu0 %v353
    %486 = vmatmul.mubr.f32.gmra.mxu0 %v352
    %v487 = vpop.f32.mrf.mxu0
    %v488 = vadd.f32 0.0, %v487
    %v489 = vpop.f32.mrf.mxu0
    %490 = vmatprep.mubr.f32.mxu0 %v357
    %491 = vmatmul.mubr.f32.gmra.mxu0 %v356
    %v492 = vpop.f32.mrf.mxu0
    %v493 = vadd.f32 0.0, %v492
    %v494 = vpop.f32.mrf.mxu0
    %495 = vmatprep.mubr.f32.mxu0 %v361
    %496 = vmatmul.mubr.f32.gmra.mxu0 %v360
    %v497 = vpop.f32.mrf.mxu0
    %v498 = vadd.f32 0.0, %v497
    %v499 = vpop.f32.mrf.mxu0
    %500 = vmatprep.mubr.f32.mxu0 %v365
    %501 = vmatmul.mubr.f32.gmra.mxu0 %v364
    %v502 = vpop.f32.mrf.mxu0
    %v503 = vadd.f32 0.0, %v502
    %v504 = vpop.f32.mrf.mxu0
    %505 = vmatprep.mubr.f32.mxu0 %v369
    %506 = vmatmul.mubr.f32.gmra.mxu0 %v368
    %v507 = vpop.f32.mrf.mxu0
    %v508 = vadd.f32 0.0, %v507
    %v509 = vpop.f32.mrf.mxu0
    %510 = vmatprep.mubr.f32.mxu0 %v373
    %511 = vmatmul.mubr.f32.gmra.mxu0 %v372
    %v512 = vpop.f32.mrf.mxu0
    %v513 = vadd.f32 0.0, %v512
    %v514 = vpop.f32.mrf.mxu0
    %515 = vmatprep.mubr.f32.mxu0 %v377
    %516 = vmatmul.mubr.f32.gmra.mxu0 %v376
    %v517 = vpop.f32.mrf.mxu0
    %v518 = vadd.f32 0.0, %v517
    %v519 = vpop.f32.mrf.mxu0
    %520 = vmatprep.mubr.f32.mxu0 %v381
    %521 = vmatmul.mubr.f32.gmra.mxu0 %v380
    %v522 = vpop.f32.mrf.mxu0
    %v523 = vadd.f32 0.0, %v522
    %v524 = vpop.f32.mrf.mxu0
    %525 = vmatprep.mubr.f32.mxu0 %v385
    %526 = vmatmul.mubr.f32.gmra.mxu0 %v384
    %v527 = vpop.f32.mrf.mxu0
    %v528 = vadd.f32 0.0, %v527
    %v529 = vpop.f32.mrf.mxu0
    %530 = vmatprep.mubr.f32.mxu0 %v389
    %531 = vmatmul.mubr.f32.gmra.mxu0 %v388
    %v532 = vpop.f32.mrf.mxu0
    %v533 = vadd.f32 0.0, %v532
    %v534 = vpop.f32.mrf.mxu0
    %535 = vmatprep.mubr.f32.mxu0 %v393
    %536 = vmatmul.mubr.f32.gmra.mxu0 %v392
    %v537 = vpop.f32.mrf.mxu0
    %v538 = vadd.f32 0.0, %v537
    %v539 = vpop.f32.mrf.mxu0
    %540 = vdwg.mxu0
    %541 = vmatprep.subr.mxu0 0.0
    %542 = vmatpush1.msra.mxu0 %v134
    %543 = vmatprep.subr.mxu0 0.0
    %544 = vmatpush1.msra.mxu0 %v133
    %545 = vmatprep.subr.mxu0 0.0
    %546 = vmatpush1.msra.mxu0 %v132
    %547 = vmatprep.subr.mxu0 0.0
    %548 = vmatpush1.msra.mxu0 %v131
    %549 = vmatprep.subr.mxu0 0.0
    %550 = vmatpush1.msra.mxu0 %v130
    %551 = vmatprep.subr.mxu0 0.0
    %552 = vmatpush1.msra.mxu0 %v129
    %553 = vmatprep.subr.mxu0 0.0
    %554 = vmatpush1.msra.mxu0 %v128
    %555 = vmatprep.subr.mxu0 0.0
    %556 = vmatpush1.msra.mxu0 %v127
    %557 = vmatprep.subr.mxu0 0.0
    %558 = vmatpush1.msra.mxu0 %v126
    %559 = vmatprep.subr.mxu0 0.0
    %560 = vmatpush1.msra.mxu0 %v125
    %561 = vmatprep.subr.mxu0 0.0
    %562 = vmatpush1.msra.mxu0 %v124
    %563 = vmatprep.subr.mxu0 0.0
    %564 = vmatpush1.msra.mxu0 %v123
    %565 = vmatprep.subr.mxu0 0.0
    %566 = vmatpush1.msra.mxu0 %v122
    %567 = vmatprep.subr.mxu0 0.0
    %568 = vmatpush1.msra.mxu0 %v121
    %569 = vmatprep.subr.mxu0 0.0
    %570 = vmatpush1.msra.mxu0 %v120
    %571 = vmatprep.subr.mxu0 0.0
    %572 = vmatpush1.msra.mxu0 %v119
    %573 = vmatprep.subr.mxu0 0.0
    %574 = vmatpush2.msra.mxu0 %v150
    %575 = vmatprep.subr.mxu0 0.0
    %576 = vmatpush2.msra.mxu0 %v149
    %577 = vmatprep.subr.mxu0 0.0
    %578 = vmatpush2.msra.mxu0 %v148
    %579 = vmatprep.subr.mxu0 0.0
    %580 = vmatpush2.msra.mxu0 %v147
    %581 = vmatprep.subr.mxu0 0.0
    %582 = vmatpush2.msra.mxu0 %v146
    %583 = vmatprep.subr.mxu0 0.0
    %584 = vmatpush2.msra.mxu0 %v145
    %585 = vmatprep.subr.mxu0 0.0
    %586 = vmatpush2.msra.mxu0 %v144
    %587 = vmatprep.subr.mxu0 0.0
    %588 = vmatpush2.msra.mxu0 %v143
    %589 = vmatprep.subr.mxu0 0.0
    %590 = vmatpush2.msra.mxu0 %v142
    %591 = vmatprep.subr.mxu0 0.0
    %592 = vmatpush2.msra.mxu0 %v141
    %593 = vmatprep.subr.mxu0 0.0
    %594 = vmatpush2.msra.mxu0 %v140
    %595 = vmatprep.subr.mxu0 0.0
    %596 = vmatpush2.msra.mxu0 %v139
    %597 = vmatprep.subr.mxu0 0.0
    %598 = vmatpush2.msra.mxu0 %v138
    %599 = vmatprep.subr.mxu0 0.0
    %600 = vmatpush2.msra.mxu0 %v137
    %601 = vmatprep.subr.mxu0 0.0
    %602 = vmatpush2.msra.mxu0 %v136
    %603 = vmatprep.subr.mxu0 0.0
    %604 = vmatpush2.msra.mxu0 %v135
    %605 = vmatprep.mubr.f32.mxu0 %v335
    %606 = vmatmul.mubr.f32.gmra.mxu0 %v334
    %v607 = vpop.f32.mrf.mxu0
    %v608 = vadd.f32 %v463, %v607
    %v609 = vpop.f32.mrf.mxu0
    %610 = vmatprep.mubr.f32.mxu0 %v339
    %611 = vmatmul.mubr.f32.gmra.mxu0 %v338
    %v612 = vpop.f32.mrf.mxu0
    %v613 = vadd.f32 %v468, %v612
    %v614 = vpop.f32.mrf.mxu0
    %615 = vmatprep.mubr.f32.mxu0 %v343
    %616 = vmatmul.mubr.f32.gmra.mxu0 %v342
    %v617 = vpop.f32.mrf.mxu0
    %v618 = vadd.f32 %v473, %v617
    %v619 = vpop.f32.mrf.mxu0
    %620 = vmatprep.mubr.f32.mxu0 %v347
    %621 = vmatmul.mubr.f32.gmra.mxu0 %v346
    %v622 = vpop.f32.mrf.mxu0
    %v623 = vadd.f32 %v478, %v622
    %v624 = vpop.f32.mrf.mxu0
    %625 = vmatprep.mubr.f32.mxu0 %v351
    %626 = vmatmul.mubr.f32.gmra.mxu0 %v350
    %v627 = vpop.f32.mrf.mxu0
    %v628 = vadd.f32 %v483, %v627
    %v629 = vpop.f32.mrf.mxu0
    %630 = vmatprep.mubr.f32.mxu0 %v355
    %631 = vmatmul.mubr.f32.gmra.mxu0 %v354
    %v632 = vpop.f32.mrf.mxu0
    %v633 = vadd.f32 %v488, %v632
    %v634 = vpop.f32.mrf.mxu0
    %635 = vmatprep.mubr.f32.mxu0 %v359
    %636 = vmatmul.mubr.f32.gmra.mxu0 %v358
    %v637 = vpop.f32.mrf.mxu0
    %v638 = vadd.f32 %v493, %v637
    %v639 = vpop.f32.mrf.mxu0
    %640 = vmatprep.mubr.f32.mxu0 %v363
    %641 = vmatmul.mubr.f32.gmra.mxu0 %v362
    %v642 = vpop.f32.mrf.mxu0
    %v643 = vadd.f32 %v498, %v642
    %v644 = vpop.f32.mrf.mxu0
    %645 = vmatprep.mubr.f32.mxu0 %v367
    %646 = vmatmul.mubr.f32.gmra.mxu0 %v366
    %v647 = vpop.f32.mrf.mxu0
    %v648 = vadd.f32 %v503, %v647
    %v649 = vpop.f32.mrf.mxu0
    %650 = vmatprep.mubr.f32.mxu0 %v371
    %651 = vmatmul.mubr.f32.gmra.mxu0 %v370
    %v652 = vpop.f32.mrf.mxu0
    %v653 = vadd.f32 %v508, %v652
    %v654 = vpop.f32.mrf.mxu0
    %655 = vmatprep.mubr.f32.mxu0 %v375
    %656 = vmatmul.mubr.f32.gmra.mxu0 %v374
    %v657 = vpop.f32.mrf.mxu0
    %v658 = vadd.f32 %v513, %v657
    %v659 = vpop.f32.mrf.mxu0
    %660 = vmatprep.mubr.f32.mxu0 %v379
    %661 = vmatmul.mubr.f32.gmra.mxu0 %v378
    %v662 = vpop.f32.mrf.mxu0
    %v663 = vadd.f32 %v518, %v662
    %v664 = vpop.f32.mrf.mxu0
    %665 = vmatprep.mubr.f32.mxu0 %v383
    %666 = vmatmul.mubr.f32.gmra.mxu0 %v382
    %v667 = vpop.f32.mrf.mxu0
    %v668 = vadd.f32 %v523, %v667
    %v669 = vpop.f32.mrf.mxu0
    %670 = vmatprep.mubr.f32.mxu0 %v387
    %671 = vmatmul.mubr.f32.gmra.mxu0 %v386
    %v672 = vpop.f32.mrf.mxu0
    %v673 = vadd.f32 %v528, %v672
    %v674 = vpop.f32.mrf.mxu0
    %675 = vmatprep.mubr.f32.mxu0 %v391
    %676 = vmatmul.mubr.f32.gmra.mxu0 %v390
    %v677 = vpop.f32.mrf.mxu0
    %v678 = vadd.f32 %v533, %v677
    %v679 = vpop.f32.mrf.mxu0
    %680 = vmatprep.mubr.f32.mxu0 %v395
    %681 = vmatmul.mubr.f32.gmra.mxu0 %v394
    %v682 = vpop.f32.mrf.mxu0
    %v683 = vadd.f32 %v538, %v682
    %v684 = vpop.f32.mrf.mxu0
    %685 = vdwg.mxu0
    %v686 = vld [vmem:[#allocation5] sm:$0xff]
    %v687 = vld [vmem:[#allocation5 + $0x8] sm:$0xff]
    %v688 = vld [vmem:[#allocation5 + $0x10] sm:$0xff]
    %v689 = vld [vmem:[#allocation5 + $0x18] sm:$0xff]
    %v690 = vld [vmem:[#allocation5 + $0x20] sm:$0xff]
    %v691 = vld [vmem:[#allocation5 + $0x28] sm:$0xff]
    %v692 = vld [vmem:[#allocation5 + $0x30] sm:$0xff]
    %v693 = vld [vmem:[#allocation5 + $0x38] sm:$0xff]
    %v694 = vld [vmem:[#allocation5 + $0x40] sm:$0xff]
    %v695 = vld [vmem:[#allocation5 + $0x48] sm:$0xff]
    %v696 = vld [vmem:[#allocation5 + $0x50] sm:$0xff]
    %v697 = vld [vmem:[#allocation5 + $0x58] sm:$0xff]
    %v698 = vld [vmem:[#allocation5 + $0x60] sm:$0xff]
    %v699 = vld [vmem:[#allocation5 + $0x68] sm:$0xff]
    %v700 = vld [vmem:[#allocation5 + $0x70] sm:$0xff]
    %v701 = vld [vmem:[#allocation5 + $0x78] sm:$0xff]
    %v702 = vld [vmem:[%s3] sm:$0xff]
    %v703 = vld [vmem:[%s3 + $0x8] sm:$0xff]
    %v704 = vld [vmem:[%s3 + $0x10] sm:$0xff]
    %v705 = vld [vmem:[%s3 + $0x18] sm:$0xff]
    %v706 = vld [vmem:[%s3 + $0x20] sm:$0xff]
    %v707 = vld [vmem:[%s3 + $0x28] sm:$0xff]
    %v708 = vld [vmem:[%s3 + $0x30] sm:$0xff]
    %v709 = vld [vmem:[%s3 + $0x38] sm:$0xff]
    %v710 = vld [vmem:[%s3 + $0x40] sm:$0xff]
    %v711 = vld [vmem:[%s3 + $0x48] sm:$0xff]
    %v712 = vld [vmem:[%s3 + $0x50] sm:$0xff]
    %v713 = vld [vmem:[%s3 + $0x58] sm:$0xff]
    %v714 = vld [vmem:[%s3 + $0x60] sm:$0xff]
    %v715 = vld [vmem:[%s3 + $0x68] sm:$0xff]
    %v716 = vld [vmem:[%s3 + $0x70] sm:$0xff]
    %v717 = vld [vmem:[%s3 + $0x78] sm:$0xff]
    %v718 = vld [vmem:[%s3 + $0x80] sm:$0xff]
    %v719 = vld [vmem:[%s3 + $0x88] sm:$0xff]
    %v720 = vld [vmem:[%s3 + $0x90] sm:$0xff]
    %v721 = vld [vmem:[%s3 + $0x98] sm:$0xff]
    %v722 = vld [vmem:[%s3 + $0xa0] sm:$0xff]
    %v723 = vld [vmem:[%s3 + $0xa8] sm:$0xff]
    %v724 = vld [vmem:[%s3 + $0xb0] sm:$0xff]
    %v725 = vld [vmem:[%s3 + $0xb8] sm:$0xff]
    %v726 = vld [vmem:[%s3 + $0xc0] sm:$0xff]
    %v727 = vld [vmem:[%s3 + $0xc8] sm:$0xff]
    %v728 = vld [vmem:[%s3 + $0xd0] sm:$0xff]
    %v729 = vld [vmem:[%s3 + $0xd8] sm:$0xff]
    %v730 = vld [vmem:[%s3 + $0xe0] sm:$0xff]
    %v731 = vld [vmem:[%s3 + $0xe8] sm:$0xff]
    %v732 = vld [vmem:[%s3 + $0xf0] sm:$0xff]
    %v733 = vld [vmem:[%s3 + $0xf8] sm:$0xff]
    %v734 = vld [vmem:[%s3 + $0x100] sm:$0xff]
    %v735 = vld [vmem:[%s3 + $0x108] sm:$0xff]
    %v736 = vld [vmem:[%s3 + $0x110] sm:$0xff]
    %v737 = vld [vmem:[%s3 + $0x118] sm:$0xff]
    %v738 = vld [vmem:[%s3 + $0x120] sm:$0xff]
    %v739 = vld [vmem:[%s3 + $0x128] sm:$0xff]
    %v740 = vld [vmem:[%s3 + $0x130] sm:$0xff]
    %v741 = vld [vmem:[%s3 + $0x138] sm:$0xff]
    %v742 = vld [vmem:[%s3 + $0x140] sm:$0xff]
    %v743 = vld [vmem:[%s3 + $0x148] sm:$0xff]
    %v744 = vld [vmem:[%s3 + $0x150] sm:$0xff]
    %v745 = vld [vmem:[%s3 + $0x158] sm:$0xff]
    %v746 = vld [vmem:[%s3 + $0x160] sm:$0xff]
    %v747 = vld [vmem:[%s3 + $0x168] sm:$0xff]
    %v748 = vld [vmem:[%s3 + $0x170] sm:$0xff]
    %v749 = vld [vmem:[%s3 + $0x178] sm:$0xff]
    %750 = vmatprep.subr.mxu0 %v748
    %751 = vmatpush1.msra.mxu0 %v747
    %752 = vmatprep.subr.mxu0 %v745
    %753 = vmatpush1.msra.mxu0 %v744
    %754 = vmatprep.subr.mxu0 %v742
    %755 = vmatpush1.msra.mxu0 %v741
    %756 = vmatprep.subr.mxu0 %v739
    %757 = vmatpush1.msra.mxu0 %v738
    %758 = vmatprep.subr.mxu0 %v736
    %759 = vmatpush1.msra.mxu0 %v735
    %760 = vmatprep.subr.mxu0 %v733
    %761 = vmatpush1.msra.mxu0 %v732
    %762 = vmatprep.subr.mxu0 %v730
    %763 = vmatpush1.msra.mxu0 %v729
    %764 = vmatprep.subr.mxu0 %v727
    %765 = vmatpush1.msra.mxu0 %v726
    %766 = vmatprep.subr.mxu0 %v724
    %767 = vmatpush1.msra.mxu0 %v723
    %768 = vmatprep.subr.mxu0 %v721
    %769 = vmatpush1.msra.mxu0 %v720
    %770 = vmatprep.subr.mxu0 %v718
    %771 = vmatpush1.msra.mxu0 %v717
    %772 = vmatprep.subr.mxu0 %v715
    %773 = vmatpush1.msra.mxu0 %v714
    %774 = vmatprep.subr.mxu0 %v712
    %775 = vmatpush1.msra.mxu0 %v711
    %776 = vmatprep.subr.mxu0 %v709
    %777 = vmatpush1.msra.mxu0 %v708
    %778 = vmatprep.subr.mxu0 %v706
    %779 = vmatpush1.msra.mxu0 %v705
    %780 = vmatprep.subr.mxu0 %v703
    %781 = vmatpush1.msra.mxu0 %v702
    %782 = vmatprep.subr.mxu0 0.0
    %783 = vmatpush2.msra.mxu0 0.0
    %784 = vmatprep.subr.mxu0 0.0
    %785 = vmatpush2.msra.mxu0 0.0
    %786 = vmatprep.subr.mxu0 0.0
    %787 = vmatpush2.msra.mxu0 0.0
    %788 = vmatprep.subr.mxu0 0.0
    %789 = vmatpush2.msra.mxu0 0.0
    %790 = vmatprep.subr.mxu0 0.0
    %791 = vmatpush2.msra.mxu0 0.0
    %792 = vmatprep.subr.mxu0 0.0
    %793 = vmatpush2.msra.mxu0 0.0
    %794 = vmatprep.subr.mxu0 0.0
    %795 = vmatpush2.msra.mxu0 0.0
    %796 = vmatprep.subr.mxu0 0.0
    %797 = vmatpush2.msra.mxu0 0.0
    %798 = vmatprep.subr.mxu0 0.0
    %799 = vmatpush2.msra.mxu0 0.0
    %800 = vmatprep.subr.mxu0 0.0
    %801 = vmatpush2.msra.mxu0 0.0
    %802 = vmatprep.subr.mxu0 0.0
    %803 = vmatpush2.msra.mxu0 0.0
    %804 = vmatprep.subr.mxu0 0.0
    %805 = vmatpush2.msra.mxu0 0.0
    %806 = vmatprep.subr.mxu0 0.0
    %807 = vmatpush2.msra.mxu0 0.0
    %808 = vmatprep.subr.mxu0 0.0
    %809 = vmatpush2.msra.mxu0 0.0
    %810 = vmatprep.subr.mxu0 0.0
    %811 = vmatpush2.msra.mxu0 0.0
    %812 = vmatprep.subr.mxu0 0.0
    %813 = vmatpush2.msra.mxu0 0.0
    %814 = vmatprep.mubr.f32.mxu0 0.0
    %815 = vmatmul.mubr.f32.gmra.mxu0 %v608
    %v816 = vpop.f32.mrf.mxu0
    %v817 = vadd.f32 0.0, %v816
    %v818 = vpop.f32.mrf.mxu0
    %v819 = vadd.f32 0.0, %v818
    %820 = vmatprep.mubr.f32.mxu0 0.0
    %821 = vmatmul.mubr.f32.gmra.mxu0 %v613
    %v822 = vpop.f32.mrf.mxu0
    %v823 = vadd.f32 0.0, %v822
    %v824 = vpop.f32.mrf.mxu0
    %v825 = vadd.f32 0.0, %v824
    %826 = vmatprep.mubr.f32.mxu0 0.0
    %827 = vmatmul.mubr.f32.gmra.mxu0 %v618
    %v828 = vpop.f32.mrf.mxu0
    %v829 = vadd.f32 0.0, %v828
    %v830 = vpop.f32.mrf.mxu0
    %v831 = vadd.f32 0.0, %v830
    %832 = vmatprep.mubr.f32.mxu0 0.0
    %833 = vmatmul.mubr.f32.gmra.mxu0 %v623
    %v834 = vpop.f32.mrf.mxu0
    %v835 = vadd.f32 0.0, %v834
    %v836 = vpop.f32.mrf.mxu0
    %v837 = vadd.f32 0.0, %v836
    %838 = vmatprep.mubr.f32.mxu0 0.0
    %839 = vmatmul.mubr.f32.gmra.mxu0 %v628
    %v840 = vpop.f32.mrf.mxu0
    %v841 = vadd.f32 0.0, %v840
    %v842 = vpop.f32.mrf.mxu0
    %v843 = vadd.f32 0.0, %v842
    %844 = vmatprep.mubr.f32.mxu0 0.0
    %845 = vmatmul.mubr.f32.gmra.mxu0 %v633
    %v846 = vpop.f32.mrf.mxu0
    %v847 = vadd.f32 0.0, %v846
    %v848 = vpop.f32.mrf.mxu0
    %v849 = vadd.f32 0.0, %v848
    %850 = vmatprep.mubr.f32.mxu0 0.0
    %851 = vmatmul.mubr.f32.gmra.mxu0 %v638
    %v852 = vpop.f32.mrf.mxu0
    %v853 = vadd.f32 0.0, %v852
    %v854 = vpop.f32.mrf.mxu0
    %v855 = vadd.f32 0.0, %v854
    %856 = vmatprep.mubr.f32.mxu0 0.0
    %857 = vmatmul.mubr.f32.gmra.mxu0 %v643
    %v858 = vpop.f32.mrf.mxu0
    %v859 = vadd.f32 0.0, %v858
    %v860 = vpop.f32.mrf.mxu0
    %v861 = vadd.f32 0.0, %v860
    %862 = vmatprep.mubr.f32.mxu0 0.0
    %863 = vmatmul.mubr.f32.gmra.mxu0 %v648
    %v864 = vpop.f32.mrf.mxu0
    %v865 = vadd.f32 0.0, %v864
    %v866 = vpop.f32.mrf.mxu0
    %v867 = vadd.f32 0.0, %v866
    %868 = vmatprep.mubr.f32.mxu0 0.0
    %869 = vmatmul.mubr.f32.gmra.mxu0 %v653
    %v870 = vpop.f32.mrf.mxu0
    %v871 = vadd.f32 0.0, %v870
    %v872 = vpop.f32.mrf.mxu0
    %v873 = vadd.f32 0.0, %v872
    %874 = vmatprep.mubr.f32.mxu0 0.0
    %875 = vmatmul.mubr.f32.gmra.mxu0 %v658
    %v876 = vpop.f32.mrf.mxu0
    %v877 = vadd.f32 0.0, %v876
    %v878 = vpop.f32.mrf.mxu0
    %v879 = vadd.f32 0.0, %v878
    %880 = vmatprep.mubr.f32.mxu0 0.0
    %881 = vmatmul.mubr.f32.gmra.mxu0 %v663
    %v882 = vpop.f32.mrf.mxu0
    %v883 = vadd.f32 0.0, %v882
    %v884 = vpop.f32.mrf.mxu0
    %v885 = vadd.f32 0.0, %v884
    %886 = vmatprep.mubr.f32.mxu0 0.0
    %887 = vmatmul.mubr.f32.gmra.mxu0 %v668
    %v888 = vpop.f32.mrf.mxu0
    %v889 = vadd.f32 0.0, %v888
    %v890 = vpop.f32.mrf.mxu0
    %v891 = vadd.f32 0.0, %v890
    %892 = vmatprep.mubr.f32.mxu0 0.0
    %893 = vmatmul.mubr.f32.gmra.mxu0 %v673
    %v894 = vpop.f32.mrf.mxu0
    %v895 = vadd.f32 0.0, %v894
    %v896 = vpop.f32.mrf.mxu0
    %v897 = vadd.f32 0.0, %v896
    %898 = vmatprep.mubr.f32.mxu0 0.0
    %899 = vmatmul.mubr.f32.gmra.mxu0 %v678
    %v900 = vpop.f32.mrf.mxu0
    %v901 = vadd.f32 0.0, %v900
    %v902 = vpop.f32.mrf.mxu0
    %v903 = vadd.f32 0.0, %v902
    %904 = vmatprep.mubr.f32.mxu0 0.0
    %905 = vmatmul.mubr.f32.gmra.mxu0 %v683
    %v906 = vpop.f32.mrf.mxu0
    %v907 = vadd.f32 0.0, %v906
    %v908 = vpop.f32.mrf.mxu0
    %v909 = vadd.f32 0.0, %v908
    %910 = vdwg.mxu0
    %911 = vmatprep.subr.mxu0 0.0
    %912 = vmatpush1.msra.mxu0 %v749
    %913 = vmatprep.subr.mxu0 0.0
    %914 = vmatpush1.msra.mxu0 %v746
    %915 = vmatprep.subr.mxu0 0.0
    %916 = vmatpush1.msra.mxu0 %v743
    %917 = vmatprep.subr.mxu0 0.0
    %918 = vmatpush1.msra.mxu0 %v740
    %919 = vmatprep.subr.mxu0 0.0
    %920 = vmatpush1.msra.mxu0 %v737
    %921 = vmatprep.subr.mxu0 0.0
    %922 = vmatpush1.msra.mxu0 %v734
    %923 = vmatprep.subr.mxu0 0.0
    %924 = vmatpush1.msra.mxu0 %v731
    %925 = vmatprep.subr.mxu0 0.0
    %926 = vmatpush1.msra.mxu0 %v728
    %927 = vmatprep.subr.mxu0 0.0
    %928 = vmatpush1.msra.mxu0 %v725
    %929 = vmatprep.subr.mxu0 0.0
    %930 = vmatpush1.msra.mxu0 %v722
    %931 = vmatprep.subr.mxu0 0.0
    %932 = vmatpush1.msra.mxu0 %v719
    %933 = vmatprep.subr.mxu0 0.0
    %934 = vmatpush1.msra.mxu0 %v716
    %935 = vmatprep.subr.mxu0 0.0
    %936 = vmatpush1.msra.mxu0 %v713
    %937 = vmatprep.subr.mxu0 0.0
    %938 = vmatpush1.msra.mxu0 %v710
    %939 = vmatprep.subr.mxu0 0.0
    %940 = vmatpush1.msra.mxu0 %v707
    %941 = vmatprep.subr.mxu0 0.0
    %942 = vmatpush1.msra.mxu0 %v704
    %943 = vmatprep.subr.mxu0 0.0
    %944 = vmatpush2.msra.mxu0 0.0
    %945 = vmatprep.subr.mxu0 0.0
    %946 = vmatpush2.msra.mxu0 0.0
    %947 = vmatprep.subr.mxu0 0.0
    %948 = vmatpush2.msra.mxu0 0.0
    %949 = vmatprep.subr.mxu0 0.0
    %950 = vmatpush2.msra.mxu0 0.0
    %951 = vmatprep.subr.mxu0 0.0
    %952 = vmatpush2.msra.mxu0 0.0
    %953 = vmatprep.subr.mxu0 0.0
    %954 = vmatpush2.msra.mxu0 0.0
    %955 = vmatprep.subr.mxu0 0.0
    %956 = vmatpush2.msra.mxu0 0.0
    %957 = vmatprep.subr.mxu0 0.0
    %958 = vmatpush2.msra.mxu0 0.0
    %959 = vmatprep.subr.mxu0 0.0
    %960 = vmatpush2.msra.mxu0 0.0
    %961 = vmatprep.subr.mxu0 0.0
    %962 = vmatpush2.msra.mxu0 0.0
    %963 = vmatprep.subr.mxu0 0.0
    %964 = vmatpush2.msra.mxu0 0.0
    %965 = vmatprep.subr.mxu0 0.0
    %966 = vmatpush2.msra.mxu0 0.0
    %967 = vmatprep.subr.mxu0 0.0
    %968 = vmatpush2.msra.mxu0 0.0
    %969 = vmatprep.subr.mxu0 0.0
    %970 = vmatpush2.msra.mxu0 0.0
    %971 = vmatprep.subr.mxu0 0.0
    %972 = vmatpush2.msra.mxu0 0.0
    %973 = vmatprep.subr.mxu0 0.0
    %974 = vmatpush2.msra.mxu0 0.0
    %975 = vmatprep.mubr.f32.mxu0 0.0
    %976 = vmatmul.mubr.f32.gmra.mxu0 %v608
    %v977 = vpop.f32.mrf.mxu0
    %v978 = vadd.f32 0.0, %v977
    %v979 = vpop.f32.mrf.mxu0
    %980 = vmatprep.mubr.f32.mxu0 0.0
    %981 = vmatmul.mubr.f32.gmra.mxu0 %v613
    %v982 = vpop.f32.mrf.mxu0
    %v983 = vadd.f32 0.0, %v982
    %v984 = vpop.f32.mrf.mxu0
    %985 = vmatprep.mubr.f32.mxu0 0.0
    %986 = vmatmul.mubr.f32.gmra.mxu0 %v618
    %v987 = vpop.f32.mrf.mxu0
    %v988 = vadd.f32 0.0, %v987
    %v989 = vpop.f32.mrf.mxu0
    %990 = vmatprep.mubr.f32.mxu0 0.0
    %991 = vmatmul.mubr.f32.gmra.mxu0 %v623
    %v992 = vpop.f32.mrf.mxu0
    %v993 = vadd.f32 0.0, %v992
    %v994 = vpop.f32.mrf.mxu0
    %995 = vmatprep.mubr.f32.mxu0 0.0
    %996 = vmatmul.mubr.f32.gmra.mxu0 %v628
    %v997 = vpop.f32.mrf.mxu0
    %v998 = vadd.f32 0.0, %v997
    %v999 = vpop.f32.mrf.mxu0
    %1000 = vmatprep.mubr.f32.mxu0 0.0
    %1001 = vmatmul.mubr.f32.gmra.mxu0 %v633
    %v1002 = vpop.f32.mrf.mxu0
    %v1003 = vadd.f32 0.0, %v1002
    %v1004 = vpop.f32.mrf.mxu0
    %1005 = vmatprep.mubr.f32.mxu0 0.0
    %1006 = vmatmul.mubr.f32.gmra.mxu0 %v638
    %v1007 = vpop.f32.mrf.mxu0
    %v1008 = vadd.f32 0.0, %v1007
    %v1009 = vpop.f32.mrf.mxu0
    %1010 = vmatprep.mubr.f32.mxu0 0.0
    %1011 = vmatmul.mubr.f32.gmra.mxu0 %v643
    %v1012 = vpop.f32.mrf.mxu0
    %v1013 = vadd.f32 0.0, %v1012
    %v1014 = vpop.f32.mrf.mxu0
    %1015 = vmatprep.mubr.f32.mxu0 0.0
    %1016 = vmatmul.mubr.f32.gmra.mxu0 %v648
    %v1017 = vpop.f32.mrf.mxu0
    %v1018 = vadd.f32 0.0, %v1017
    %v1019 = vpop.f32.mrf.mxu0
    %1020 = vmatprep.mubr.f32.mxu0 0.0
    %1021 = vmatmul.mubr.f32.gmra.mxu0 %v653
    %v1022 = vpop.f32.mrf.mxu0
    %v1023 = vadd.f32 0.0, %v1022
    %v1024 = vpop.f32.mrf.mxu0
    %1025 = vmatprep.mubr.f32.mxu0 0.0
    %1026 = vmatmul.mubr.f32.gmra.mxu0 %v658
    %v1027 = vpop.f32.mrf.mxu0
    %v1028 = vadd.f32 0.0, %v1027
    %v1029 = vpop.f32.mrf.mxu0
    %1030 = vmatprep.mubr.f32.mxu0 0.0
    %1031 = vmatmul.mubr.f32.gmra.mxu0 %v663
    %v1032 = vpop.f32.mrf.mxu0
    %v1033 = vadd.f32 0.0, %v1032
    %v1034 = vpop.f32.mrf.mxu0
    %1035 = vmatprep.mubr.f32.mxu0 0.0
    %1036 = vmatmul.mubr.f32.gmra.mxu0 %v668
    %v1037 = vpop.f32.mrf.mxu0
    %v1038 = vadd.f32 0.0, %v1037
    %v1039 = vpop.f32.mrf.mxu0
    %1040 = vmatprep.mubr.f32.mxu0 0.0
    %1041 = vmatmul.mubr.f32.gmra.mxu0 %v673
    %v1042 = vpop.f32.mrf.mxu0
    %v1043 = vadd.f32 0.0, %v1042
    %v1044 = vpop.f32.mrf.mxu0
    %1045 = vmatprep.mubr.f32.mxu0 0.0
    %1046 = vmatmul.mubr.f32.gmra.mxu0 %v678
    %v1047 = vpop.f32.mrf.mxu0
    %v1048 = vadd.f32 0.0, %v1047
    %v1049 = vpop.f32.mrf.mxu0
    %1050 = vmatprep.mubr.f32.mxu0 0.0
    %1051 = vmatmul.mubr.f32.gmra.mxu0 %v683
    %v1052 = vpop.f32.mrf.mxu0
    %v1053 = vadd.f32 0.0, %v1052
    %v1054 = vpop.f32.mrf.mxu0
    %1055 = vdwg.mxu0
    %v1056 = vld [vmem:[#allocation7] sm:$0xff]
    %v1057 = vld [vmem:[#allocation7 + $0x8] sm:$0xff]
    %v1058 = vld [vmem:[#allocation7 + $0x10] sm:$0xff]
    %v1059 = vld [vmem:[#allocation7 + $0x18] sm:$0xff]
    %v1060 = vld [vmem:[#allocation7 + $0x20] sm:$0xff]
    %v1061 = vld [vmem:[#allocation7 + $0x28] sm:$0xff]
    %v1062 = vld [vmem:[#allocation7 + $0x30] sm:$0xff]
    %v1063 = vld [vmem:[#allocation7 + $0x38] sm:$0xff]
    %v1064 = vld [vmem:[#allocation7 + $0x40] sm:$0xff]
    %v1065 = vld [vmem:[#allocation7 + $0x48] sm:$0xff]
    %v1066 = vld [vmem:[#allocation7 + $0x50] sm:$0xff]
    %v1067 = vld [vmem:[#allocation7 + $0x58] sm:$0xff]
    %v1068 = vld [vmem:[#allocation7 + $0x60] sm:$0xff]
    %v1069 = vld [vmem:[#allocation7 + $0x68] sm:$0xff]
    %v1070 = vld [vmem:[#allocation7 + $0x70] sm:$0xff]
    %v1071 = vld [vmem:[#allocation7 + $0x78] sm:$0xff]
    %v1072 = vld [vmem:[#allocation7 + $0x80] sm:$0xff]
    %v1073 = vld [vmem:[#allocation7 + $0x88] sm:$0xff]
    %v1074 = vld [vmem:[#allocation7 + $0x90] sm:$0xff]
    %v1075 = vld [vmem:[#allocation7 + $0x98] sm:$0xff]
    %v1076 = vld [vmem:[#allocation7 + $0xa0] sm:$0xff]
    %v1077 = vld [vmem:[#allocation7 + $0xa8] sm:$0xff]
    %v1078 = vld [vmem:[#allocation7 + $0xb0] sm:$0xff]
    %v1079 = vld [vmem:[#allocation7 + $0xb8] sm:$0xff]
    %v1080 = vld [vmem:[#allocation7 + $0xc0] sm:$0xff]
    %v1081 = vld [vmem:[#allocation7 + $0xc8] sm:$0xff]
    %v1082 = vld [vmem:[#allocation7 + $0xd0] sm:$0xff]
    %v1083 = vld [vmem:[#allocation7 + $0xd8] sm:$0xff]
    %v1084 = vld [vmem:[#allocation7 + $0xe0] sm:$0xff]
    %v1085 = vld [vmem:[#allocation7 + $0xe8] sm:$0xff]
    %v1086 = vld [vmem:[#allocation7 + $0xf0] sm:$0xff]
    %v1087 = vld [vmem:[#allocation7 + $0xf8] sm:$0xff]
    %v1088 = vld [vmem:[#allocation7 + $0x100] sm:$0xff]
    %v1089 = vld [vmem:[#allocation7 + $0x108] sm:$0xff]
    %v1090 = vld [vmem:[#allocation7 + $0x110] sm:$0xff]
    %v1091 = vld [vmem:[#allocation7 + $0x118] sm:$0xff]
    %v1092 = vld [vmem:[#allocation7 + $0x120] sm:$0xff]
    %v1093 = vld [vmem:[#allocation7 + $0x128] sm:$0xff]
    %v1094 = vld [vmem:[#allocation7 + $0x130] sm:$0xff]
    %v1095 = vld [vmem:[#allocation7 + $0x138] sm:$0xff]
    %v1096 = vld [vmem:[#allocation7 + $0x140] sm:$0xff]
    %v1097 = vld [vmem:[#allocation7 + $0x148] sm:$0xff]
    %v1098 = vld [vmem:[#allocation7 + $0x150] sm:$0xff]
    %v1099 = vld [vmem:[#allocation7 + $0x158] sm:$0xff]
    %v1100 = vld [vmem:[#allocation7 + $0x160] sm:$0xff]
    %v1101 = vld [vmem:[#allocation7 + $0x168] sm:$0xff]
    %v1102 = vld [vmem:[#allocation7 + $0x170] sm:$0xff]
    %v1103 = vld [vmem:[#allocation7 + $0x178] sm:$0xff]
    %1104 = vmatprep.subr.mxu0 %v1102
    %1105 = vmatpush1.msra.mxu0 %v1101
    %1106 = vmatprep.subr.mxu0 %v1099
    %1107 = vmatpush1.msra.mxu0 %v1098
    %1108 = vmatprep.subr.mxu0 %v1096
    %1109 = vmatpush1.msra.mxu0 %v1095
    %1110 = vmatprep.subr.mxu0 %v1093
    %1111 = vmatpush1.msra.mxu0 %v1092
    %1112 = vmatprep.subr.mxu0 %v1090
    %1113 = vmatpush1.msra.mxu0 %v1089
    %1114 = vmatprep.subr.mxu0 %v1087
    %1115 = vmatpush1.msra.mxu0 %v1086
    %1116 = vmatprep.subr.mxu0 %v1084
    %1117 = vmatpush1.msra.mxu0 %v1083
    %1118 = vmatprep.subr.mxu0 %v1081
    %1119 = vmatpush1.msra.mxu0 %v1080
    %1120 = vmatprep.subr.mxu0 %v1078
    %1121 = vmatpush1.msra.mxu0 %v1077
    %1122 = vmatprep.subr.mxu0 %v1075
    %1123 = vmatpush1.msra.mxu0 %v1074
    %1124 = vmatprep.subr.mxu0 %v1072
    %1125 = vmatpush1.msra.mxu0 %v1071
    %1126 = vmatprep.subr.mxu0 %v1069
    %1127 = vmatpush1.msra.mxu0 %v1068
    %1128 = vmatprep.subr.mxu0 %v1066
    %1129 = vmatpush1.msra.mxu0 %v1065
    %1130 = vmatprep.subr.mxu0 %v1063
    %1131 = vmatpush1.msra.mxu0 %v1062
    %1132 = vmatprep.subr.mxu0 %v1060
    %1133 = vmatpush1.msra.mxu0 %v1059
    %1134 = vmatprep.subr.mxu0 %v1057
    %1135 = vmatpush1.msra.mxu0 %v1056
    %1136 = vmatprep.subr.mxu0 0.0
    %1137 = vmatpush2.msra.mxu0 0.0
    %1138 = vmatprep.subr.mxu0 0.0
    %1139 = vmatpush2.msra.mxu0 0.0
    %1140 = vmatprep.subr.mxu0 0.0
    %1141 = vmatpush2.msra.mxu0 0.0
    %1142 = vmatprep.subr.mxu0 0.0
    %1143 = vmatpush2.msra.mxu0 0.0
    %1144 = vmatprep.subr.mxu0 0.0
    %1145 = vmatpush2.msra.mxu0 0.0
    %1146 = vmatprep.subr.mxu0 0.0
    %1147 = vmatpush2.msra.mxu0 0.0
    %1148 = vmatprep.subr.mxu0 0.0
    %1149 = vmatpush2.msra.mxu0 0.0
    %1150 = vmatprep.subr.mxu0 0.0
    %1151 = vmatpush2.msra.mxu0 0.0
    %1152 = vmatprep.subr.mxu0 0.0
    %1153 = vmatpush2.msra.mxu0 0.0
    %1154 = vmatprep.subr.mxu0 0.0
    %1155 = vmatpush2.msra.mxu0 0.0
    %1156 = vmatprep.subr.mxu0 0.0
    %1157 = vmatpush2.msra.mxu0 0.0
    %1158 = vmatprep.subr.mxu0 0.0
    %1159 = vmatpush2.msra.mxu0 0.0
    %1160 = vmatprep.subr.mxu0 0.0
    %1161 = vmatpush2.msra.mxu0 0.0
    %1162 = vmatprep.subr.mxu0 0.0
    %1163 = vmatpush2.msra.mxu0 0.0
    %1164 = vmatprep.subr.mxu0 0.0
    %1165 = vmatpush2.msra.mxu0 0.0
    %1166 = vmatprep.subr.mxu0 0.0
    %1167 = vmatpush2.msra.mxu0 0.0
    %1168 = vmatprep.mubr.f32.mxu0 0.0
    %1169 = vmatmul.mubr.f32.gmra.mxu0 %v686
    %v1170 = vpop.f32.mrf.mxu0
    %v1171 = vadd.f32 0.0, %v1170
    %v1172 = vpop.f32.mrf.mxu0
    %v1173 = vadd.f32 0.0, %v1172
    %1174 = vmatprep.mubr.f32.mxu0 0.0
    %1175 = vmatmul.mubr.f32.gmra.mxu0 %v687
    %v1176 = vpop.f32.mrf.mxu0
    %v1177 = vadd.f32 0.0, %v1176
    %v1178 = vpop.f32.mrf.mxu0
    %v1179 = vadd.f32 0.0, %v1178
    %1180 = vmatprep.mubr.f32.mxu0 0.0
    %1181 = vmatmul.mubr.f32.gmra.mxu0 %v688
    %v1182 = vpop.f32.mrf.mxu0
    %v1183 = vadd.f32 0.0, %v1182
    %v1184 = vpop.f32.mrf.mxu0
    %v1185 = vadd.f32 0.0, %v1184
    %1186 = vmatprep.mubr.f32.mxu0 0.0
    %1187 = vmatmul.mubr.f32.gmra.mxu0 %v689
    %v1188 = vpop.f32.mrf.mxu0
    %v1189 = vadd.f32 0.0, %v1188
    %v1190 = vpop.f32.mrf.mxu0
    %v1191 = vadd.f32 0.0, %v1190
    %1192 = vmatprep.mubr.f32.mxu0 0.0
    %1193 = vmatmul.mubr.f32.gmra.mxu0 %v690
    %v1194 = vpop.f32.mrf.mxu0
    %v1195 = vadd.f32 0.0, %v1194
    %v1196 = vpop.f32.mrf.mxu0
    %v1197 = vadd.f32 0.0, %v1196
    %1198 = vmatprep.mubr.f32.mxu0 0.0
    %1199 = vmatmul.mubr.f32.gmra.mxu0 %v691
    %v1200 = vpop.f32.mrf.mxu0
    %v1201 = vadd.f32 0.0, %v1200
    %v1202 = vpop.f32.mrf.mxu0
    %v1203 = vadd.f32 0.0, %v1202
    %1204 = vmatprep.mubr.f32.mxu0 0.0
    %1205 = vmatmul.mubr.f32.gmra.mxu0 %v692
    %v1206 = vpop.f32.mrf.mxu0
    %v1207 = vadd.f32 0.0, %v1206
    %v1208 = vpop.f32.mrf.mxu0
    %v1209 = vadd.f32 0.0, %v1208
    %1210 = vmatprep.mubr.f32.mxu0 0.0
    %1211 = vmatmul.mubr.f32.gmra.mxu0 %v693
    %v1212 = vpop.f32.mrf.mxu0
    %v1213 = vadd.f32 0.0, %v1212
    %v1214 = vpop.f32.mrf.mxu0
    %v1215 = vadd.f32 0.0, %v1214
    %1216 = vmatprep.mubr.f32.mxu0 0.0
    %1217 = vmatmul.mubr.f32.gmra.mxu0 %v694
    %v1218 = vpop.f32.mrf.mxu0
    %v1219 = vadd.f32 0.0, %v1218
    %v1220 = vpop.f32.mrf.mxu0
    %v1221 = vadd.f32 0.0, %v1220
    %1222 = vmatprep.mubr.f32.mxu0 0.0
    %1223 = vmatmul.mubr.f32.gmra.mxu0 %v695
    %v1224 = vpop.f32.mrf.mxu0
    %v1225 = vadd.f32 0.0, %v1224
    %v1226 = vpop.f32.mrf.mxu0
    %v1227 = vadd.f32 0.0, %v1226
    %1228 = vmatprep.mubr.f32.mxu0 0.0
    %1229 = vmatmul.mubr.f32.gmra.mxu0 %v696
    %v1230 = vpop.f32.mrf.mxu0
    %v1231 = vadd.f32 0.0, %v1230
    %v1232 = vpop.f32.mrf.mxu0
    %v1233 = vadd.f32 0.0, %v1232
    %1234 = vmatprep.mubr.f32.mxu0 0.0
    %1235 = vmatmul.mubr.f32.gmra.mxu0 %v697
    %v1236 = vpop.f32.mrf.mxu0
    %v1237 = vadd.f32 0.0, %v1236
    %v1238 = vpop.f32.mrf.mxu0
    %v1239 = vadd.f32 0.0, %v1238
    %1240 = vmatprep.mubr.f32.mxu0 0.0
    %1241 = vmatmul.mubr.f32.gmra.mxu0 %v698
    %v1242 = vpop.f32.mrf.mxu0
    %v1243 = vadd.f32 0.0, %v1242
    %v1244 = vpop.f32.mrf.mxu0
    %v1245 = vadd.f32 0.0, %v1244
    %1246 = vmatprep.mubr.f32.mxu0 0.0
    %1247 = vmatmul.mubr.f32.gmra.mxu0 %v699
    %v1248 = vpop.f32.mrf.mxu0
    %v1249 = vadd.f32 0.0, %v1248
    %v1250 = vpop.f32.mrf.mxu0
    %v1251 = vadd.f32 0.0, %v1250
    %1252 = vmatprep.mubr.f32.mxu0 0.0
    %1253 = vmatmul.mubr.f32.gmra.mxu0 %v700
    %v1254 = vpop.f32.mrf.mxu0
    %v1255 = vadd.f32 0.0, %v1254
    %v1256 = vpop.f32.mrf.mxu0
    %v1257 = vadd.f32 0.0, %v1256
    %1258 = vmatprep.mubr.f32.mxu0 0.0
    %1259 = vmatmul.mubr.f32.gmra.mxu0 %v701
    %v1260 = vpop.f32.mrf.mxu0
    %v1261 = vadd.f32 0.0, %v1260
    %v1262 = vpop.f32.mrf.mxu0
    %v1263 = vadd.f32 0.0, %v1262
    %1264 = vdwg.mxu0
    %1265 = vmatprep.subr.mxu0 0.0
    %1266 = vmatpush1.msra.mxu0 %v1103
    %1267 = vmatprep.subr.mxu0 0.0
    %1268 = vmatpush1.msra.mxu0 %v1100
    %1269 = vmatprep.subr.mxu0 0.0
    %1270 = vmatpush1.msra.mxu0 %v1097
    %1271 = vmatprep.subr.mxu0 0.0
    %1272 = vmatpush1.msra.mxu0 %v1094
    %1273 = vmatprep.subr.mxu0 0.0
    %1274 = vmatpush1.msra.mxu0 %v1091
    %1275 = vmatprep.subr.mxu0 0.0
    %1276 = vmatpush1.msra.mxu0 %v1088
    %1277 = vmatprep.subr.mxu0 0.0
    %1278 = vmatpush1.msra.mxu0 %v1085
    %1279 = vmatprep.subr.mxu0 0.0
    %1280 = vmatpush1.msra.mxu0 %v1082
    %1281 = vmatprep.subr.mxu0 0.0
    %1282 = vmatpush1.msra.mxu0 %v1079
    %1283 = vmatprep.subr.mxu0 0.0
    %1284 = vmatpush1.msra.mxu0 %v1076
    %1285 = vmatprep.subr.mxu0 0.0
    %1286 = vmatpush1.msra.mxu0 %v1073
    %1287 = vmatprep.subr.mxu0 0.0
    %1288 = vmatpush1.msra.mxu0 %v1070
    %1289 = vmatprep.subr.mxu0 0.0
    %1290 = vmatpush1.msra.mxu0 %v1067
    %1291 = vmatprep.subr.mxu0 0.0
    %1292 = vmatpush1.msra.mxu0 %v1064
    %1293 = vmatprep.subr.mxu0 0.0
    %1294 = vmatpush1.msra.mxu0 %v1061
    %1295 = vmatprep.subr.mxu0 0.0
    %1296 = vmatpush1.msra.mxu0 %v1058
    %1297 = vmatprep.subr.mxu0 0.0
    %1298 = vmatpush2.msra.mxu0 0.0
    %1299 = vmatprep.subr.mxu0 0.0
    %1300 = vmatpush2.msra.mxu0 0.0
    %1301 = vmatprep.subr.mxu0 0.0
    %1302 = vmatpush2.msra.mxu0 0.0
    %1303 = vmatprep.subr.mxu0 0.0
    %1304 = vmatpush2.msra.mxu0 0.0
    %1305 = vmatprep.subr.mxu0 0.0
    %1306 = vmatpush2.msra.mxu0 0.0
    %1307 = vmatprep.subr.mxu0 0.0
    %1308 = vmatpush2.msra.mxu0 0.0
    %1309 = vmatprep.subr.mxu0 0.0
    %1310 = vmatpush2.msra.mxu0 0.0
    %1311 = vmatprep.subr.mxu0 0.0
    %1312 = vmatpush2.msra.mxu0 0.0
    %1313 = vmatprep.subr.mxu0 0.0
    %1314 = vmatpush2.msra.mxu0 0.0
    %1315 = vmatprep.subr.mxu0 0.0
    %1316 = vmatpush2.msra.mxu0 0.0
    %1317 = vmatprep.subr.mxu0 0.0
    %1318 = vmatpush2.msra.mxu0 0.0
    %1319 = vmatprep.subr.mxu0 0.0
    %1320 = vmatpush2.msra.mxu0 0.0
    %1321 = vmatprep.subr.mxu0 0.0
    %1322 = vmatpush2.msra.mxu0 0.0
    %1323 = vmatprep.subr.mxu0 0.0
    %1324 = vmatpush2.msra.mxu0 0.0
    %1325 = vmatprep.subr.mxu0 0.0
    %1326 = vmatpush2.msra.mxu0 0.0
    %1327 = vmatprep.subr.mxu0 0.0
    %1328 = vmatpush2.msra.mxu0 0.0
    %1329 = vmatprep.mubr.f32.mxu0 0.0
    %1330 = vmatmul.mubr.f32.gmra.mxu0 %v686
    %v1331 = vpop.f32.mrf.mxu0
    %v1332 = vadd.f32 0.0, %v1331
    %v1333 = vpop.f32.mrf.mxu0
    %1334 = vmatprep.mubr.f32.mxu0 0.0
    %1335 = vmatmul.mubr.f32.gmra.mxu0 %v687
    %v1336 = vpop.f32.mrf.mxu0
    %v1337 = vadd.f32 0.0, %v1336
    %v1338 = vpop.f32.mrf.mxu0
    %1339 = vmatprep.mubr.f32.mxu0 0.0
    %1340 = vmatmul.mubr.f32.gmra.mxu0 %v688
    %v1341 = vpop.f32.mrf.mxu0
    %v1342 = vadd.f32 0.0, %v1341
    %v1343 = vpop.f32.mrf.mxu0
    %1344 = vmatprep.mubr.f32.mxu0 0.0
    %1345 = vmatmul.mubr.f32.gmra.mxu0 %v689
    %v1346 = vpop.f32.mrf.mxu0
    %v1347 = vadd.f32 0.0, %v1346
    %v1348 = vpop.f32.mrf.mxu0
    %1349 = vmatprep.mubr.f32.mxu0 0.0
    %1350 = vmatmul.mubr.f32.gmra.mxu0 %v690
    %v1351 = vpop.f32.mrf.mxu0
    %v1352 = vadd.f32 0.0, %v1351
    %v1353 = vpop.f32.mrf.mxu0
    %1354 = vmatprep.mubr.f32.mxu0 0.0
    %1355 = vmatmul.mubr.f32.gmra.mxu0 %v691
    %v1356 = vpop.f32.mrf.mxu0
    %v1357 = vadd.f32 0.0, %v1356
    %v1358 = vpop.f32.mrf.mxu0
    %1359 = vmatprep.mubr.f32.mxu0 0.0
    %1360 = vmatmul.mubr.f32.gmra.mxu0 %v692
    %v1361 = vpop.f32.mrf.mxu0
    %v1362 = vadd.f32 0.0, %v1361
    %v1363 = vpop.f32.mrf.mxu0
    %1364 = vmatprep.mubr.f32.mxu0 0.0
    %1365 = vmatmul.mubr.f32.gmra.mxu0 %v693
    %v1366 = vpop.f32.mrf.mxu0
    %v1367 = vadd.f32 0.0, %v1366
    %v1368 = vpop.f32.mrf.mxu0
    %1369 = vmatprep.mubr.f32.mxu0 0.0
    %1370 = vmatmul.mubr.f32.gmra.mxu0 %v694
    %v1371 = vpop.f32.mrf.mxu0
    %v1372 = vadd.f32 0.0, %v1371
    %v1373 = vpop.f32.mrf.mxu0
    %1374 = vmatprep.mubr.f32.mxu0 0.0
    %1375 = vmatmul.mubr.f32.gmra.mxu0 %v695
    %v1376 = vpop.f32.mrf.mxu0
    %v1377 = vadd.f32 0.0, %v1376
    %v1378 = vpop.f32.mrf.mxu0
    %1379 = vmatprep.mubr.f32.mxu0 0.0
    %1380 = vmatmul.mubr.f32.gmra.mxu0 %v696
    %v1381 = vpop.f32.mrf.mxu0
    %v1382 = vadd.f32 0.0, %v1381
    %v1383 = vpop.f32.mrf.mxu0
    %1384 = vmatprep.mubr.f32.mxu0 0.0
    %1385 = vmatmul.mubr.f32.gmra.mxu0 %v697
    %v1386 = vpop.f32.mrf.mxu0
    %v1387 = vadd.f32 0.0, %v1386
    %v1388 = vpop.f32.mrf.mxu0
    %1389 = vmatprep.mubr.f32.mxu0 0.0
    %1390 = vmatmul.mubr.f32.gmra.mxu0 %v698
    %v1391 = vpop.f32.mrf.mxu0
    %v1392 = vadd.f32 0.0, %v1391
    %v1393 = vpop.f32.mrf.mxu0
    %1394 = vmatprep.mubr.f32.mxu0 0.0
    %1395 = vmatmul.mubr.f32.gmra.mxu0 %v699
    %v1396 = vpop.f32.mrf.mxu0
    %v1397 = vadd.f32 0.0, %v1396
    %v1398 = vpop.f32.mrf.mxu0
    %1399 = vmatprep.mubr.f32.mxu0 0.0
    %1400 = vmatmul.mubr.f32.gmra.mxu0 %v700
    %v1401 = vpop.f32.mrf.mxu0
    %v1402 = vadd.f32 0.0, %v1401
    %v1403 = vpop.f32.mrf.mxu0
    %1404 = vmatprep.mubr.f32.mxu0 0.0
    %1405 = vmatmul.mubr.f32.gmra.mxu0 %v701
    %v1406 = vpop.f32.mrf.mxu0
    %v1407 = vadd.f32 0.0, %v1406
    %v1408 = vpop.f32.mrf.mxu0
    %1409 = vdwg.mxu0
    %v1410 = vadd.f32 %v817, %v1171
    %v1411 = vadd.f32 %v819, %v1173
    %v1412 = vadd.f32 %v823, %v1177
    %v1413 = vadd.f32 %v825, %v1179
    %v1414 = vadd.f32 %v829, %v1183
    %v1415 = vadd.f32 %v831, %v1185
    %v1416 = vadd.f32 %v835, %v1189
    %v1417 = vadd.f32 %v837, %v1191
    %v1418 = vadd.f32 %v841, %v1195
    %v1419 = vadd.f32 %v843, %v1197
    %v1420 = vadd.f32 %v847, %v1201
    %v1421 = vadd.f32 %v849, %v1203
    %v1422 = vadd.f32 %v853, %v1207
    %v1423 = vadd.f32 %v855, %v1209
    %v1424 = vadd.f32 %v859, %v1213
    %v1425 = vadd.f32 %v861, %v1215
    %v1426 = vadd.f32 %v865, %v1219
    %v1427 = vadd.f32 %v867, %v1221
    %v1428 = vadd.f32 %v871, %v1225
    %v1429 = vadd.f32 %v873, %v1227
    %v1430 = vadd.f32 %v877, %v1231
    %v1431 = vadd.f32 %v879, %v1233
    %v1432 = vadd.f32 %v883, %v1237
    %v1433 = vadd.f32 %v885, %v1239
    %v1434 = vadd.f32 %v889, %v1243
    %v1435 = vadd.f32 %v891, %v1245
    %v1436 = vadd.f32 %v895, %v1249
    %v1437 = vadd.f32 %v897, %v1251
    %v1438 = vadd.f32 %v901, %v1255
    %v1439 = vadd.f32 %v903, %v1257
    %v1440 = vadd.f32 %v907, %v1261
    %v1441 = vadd.f32 %v909, %v1263
    %v1442 = vld [vmem:[%s5] sm:$0x3]
    %v1444 = vlaneseq
    %v1445 = vshrl.u32 %v1444, 7
    %v1446 = vsub.s32 0, %v1445
    %v1447 = vrot.slane %v1442, %v1446
    %v1448 = vlaneseq
    %v1449 = vshrl.u32 %v1448, 7
    %v1450 = vsub.s32 1, %v1449
    %v1451 = vrot.slane %v1442, %v1450
    %v1454 = vadd.f32 %v1410, %v1447
    %v1455 = vadd.f32 %v1411, %v1451
    %v1456 = vadd.f32 %v1412, %v1447
    %v1457 = vadd.f32 %v1413, %v1451
    %v1458 = vadd.f32 %v1414, %v1447
    %v1459 = vadd.f32 %v1415, %v1451
    %v1460 = vadd.f32 %v1416, %v1447
    %v1461 = vadd.f32 %v1417, %v1451
    %v1462 = vadd.f32 %v1418, %v1447
    %v1463 = vadd.f32 %v1419, %v1451
    %v1464 = vadd.f32 %v1420, %v1447
    %v1465 = vadd.f32 %v1421, %v1451
    %v1466 = vadd.f32 %v1422, %v1447
    %v1467 = vadd.f32 %v1423, %v1451
    %v1468 = vadd.f32 %v1424, %v1447
    %v1469 = vadd.f32 %v1425, %v1451
    %v1470 = vadd.f32 %v1426, %v1447
    %v1471 = vadd.f32 %v1427, %v1451
    %v1472 = vadd.f32 %v1428, %v1447
    %v1473 = vadd.f32 %v1429, %v1451
    %v1474 = vadd.f32 %v1430, %v1447
    %v1475 = vadd.f32 %v1431, %v1451
    %v1476 = vadd.f32 %v1432, %v1447
    %v1477 = vadd.f32 %v1433, %v1451
    %v1478 = vadd.f32 %v1434, %v1447
    %v1479 = vadd.f32 %v1435, %v1451
    %v1480 = vadd.f32 %v1436, %v1447
    %v1481 = vadd.f32 %v1437, %v1451
    %v1482 = vadd.f32 %v1438, %v1447
    %v1483 = vadd.f32 %v1439, %v1451
    %v1484 = vadd.f32 %v1440, %v1447
    %v1485 = vadd.f32 %v1441, %v1451
    %v1486 = vxor.u32 %v1454, 2147483648
    %v1487 = vxor.u32 %v1455, 2147483648
    %v1488 = vxor.u32 %v1456, 2147483648
    %v1489 = vxor.u32 %v1457, 2147483648
    %v1490 = vxor.u32 %v1458, 2147483648
    %v1491 = vxor.u32 %v1459, 2147483648
    %v1492 = vxor.u32 %v1460, 2147483648
    %v1493 = vxor.u32 %v1461, 2147483648
    %v1494 = vxor.u32 %v1462, 2147483648
    %v1495 = vxor.u32 %v1463, 2147483648
    %v1496 = vxor.u32 %v1464, 2147483648
    %v1497 = vxor.u32 %v1465, 2147483648
    %v1498 = vxor.u32 %v1466, 2147483648
    %v1499 = vxor.u32 %v1467, 2147483648
    %v1500 = vxor.u32 %v1468, 2147483648
    %v1501 = vxor.u32 %v1469, 2147483648
    %v1502 = vxor.u32 %v1470, 2147483648
    %v1503 = vxor.u32 %v1471, 2147483648
    %v1504 = vxor.u32 %v1472, 2147483648
    %v1505 = vxor.u32 %v1473, 2147483648
    %v1506 = vxor.u32 %v1474, 2147483648
    %v1507 = vxor.u32 %v1475, 2147483648
    %v1508 = vxor.u32 %v1476, 2147483648
    %v1509 = vxor.u32 %v1477, 2147483648
    %v1510 = vxor.u32 %v1478, 2147483648
    %v1511 = vxor.u32 %v1479, 2147483648
    %v1512 = vxor.u32 %v1480, 2147483648
    %v1513 = vxor.u32 %v1481, 2147483648
    %v1514 = vxor.u32 %v1482, 2147483648
    %v1515 = vxor.u32 %v1483, 2147483648
    %v1516 = vxor.u32 %v1484, 2147483648
    %v1517 = vxor.u32 %v1485, 2147483648
    %v1518 = vmul.f32 %v1486, 1.442695
    %v1519 = vpow.pop %v1518
    %v1520 = vmul.f32 %v1487, 1.442695
    %v1521 = vpow.pop %v1520
    %v1522 = vmul.f32 %v1488, 1.442695
    %v1523 = vpow.pop %v1522
    %v1524 = vmul.f32 %v1489, 1.442695
    %v1525 = vpow.pop %v1524
    %v1526 = vmul.f32 %v1490, 1.442695
    %v1527 = vpow.pop %v1526
    %v1528 = vmul.f32 %v1491, 1.442695
    %v1529 = vpow.pop %v1528
    %v1530 = vmul.f32 %v1492, 1.442695
    %v1531 = vpow.pop %v1530
    %v1532 = vmul.f32 %v1493, 1.442695
    %v1533 = vpow.pop %v1532
    %v1534 = vmul.f32 %v1494, 1.442695
    %v1535 = vpow.pop %v1534
    %v1536 = vmul.f32 %v1495, 1.442695
    %v1537 = vpow.pop %v1536
    %v1538 = vmul.f32 %v1496, 1.442695
    %v1539 = vpow.pop %v1538
    %v1540 = vmul.f32 %v1497, 1.442695
    %v1541 = vpow.pop %v1540
    %v1542 = vmul.f32 %v1498, 1.442695
    %v1543 = vpow.pop %v1542
    %v1544 = vmul.f32 %v1499, 1.442695
    %v1545 = vpow.pop %v1544
    %v1546 = vmul.f32 %v1500, 1.442695
    %v1547 = vpow.pop %v1546
    %v1548 = vmul.f32 %v1501, 1.442695
    %v1549 = vpow.pop %v1548
    %v1550 = vmul.f32 %v1502, 1.442695
    %v1551 = vpow.pop %v1550
    %v1552 = vmul.f32 %v1503, 1.442695
    %v1553 = vpow.pop %v1552
    %v1554 = vmul.f32 %v1504, 1.442695
    %v1555 = vpow.pop %v1554
    %v1556 = vmul.f32 %v1505, 1.442695
    %v1557 = vpow.pop %v1556
    %v1558 = vmul.f32 %v1506, 1.442695
    %v1559 = vpow.pop %v1558
    %v1560 = vmul.f32 %v1507, 1.442695
    %v1561 = vpow.pop %v1560
    %v1562 = vmul.f32 %v1508, 1.442695
    %v1563 = vpow.pop %v1562
    %v1564 = vmul.f32 %v1509, 1.442695
    %v1565 = vpow.pop %v1564
    %v1566 = vmul.f32 %v1510, 1.442695
    %v1567 = vpow.pop %v1566
    %v1568 = vmul.f32 %v1511, 1.442695
    %v1569 = vpow.pop %v1568
    %v1570 = vmul.f32 %v1512, 1.442695
    %v1571 = vpow.pop %v1570
    %v1572 = vmul.f32 %v1513, 1.442695
    %v1573 = vpow.pop %v1572
    %v1574 = vmul.f32 %v1514, 1.442695
    %v1575 = vpow.pop %v1574
    %v1576 = vmul.f32 %v1515, 1.442695
    %v1577 = vpow.pop %v1576
    %v1578 = vmul.f32 %v1516, 1.442695
    %v1579 = vpow.pop %v1578
    %v1580 = vmul.f32 %v1517, 1.442695
    %v1581 = vpow.pop %v1580
    %v1582 = vadd.f32 %v1519, 1.0
    %v1583 = vadd.f32 %v1521, 1.0
    %v1584 = vadd.f32 %v1523, 1.0
    %v1585 = vadd.f32 %v1525, 1.0
    %v1586 = vadd.f32 %v1527, 1.0
    %v1587 = vadd.f32 %v1529, 1.0
    %v1588 = vadd.f32 %v1531, 1.0
    %v1589 = vadd.f32 %v1533, 1.0
    %v1590 = vadd.f32 %v1535, 1.0
    %v1591 = vadd.f32 %v1537, 1.0
    %v1592 = vadd.f32 %v1539, 1.0
    %v1593 = vadd.f32 %v1541, 1.0
    %v1594 = vadd.f32 %v1543, 1.0
    %v1595 = vadd.f32 %v1545, 1.0
    %v1596 = vadd.f32 %v1547, 1.0
    %v1597 = vadd.f32 %v1549, 1.0
    %v1598 = vadd.f32 %v1551, 1.0
    %v1599 = vadd.f32 %v1553, 1.0
    %v1600 = vadd.f32 %v1555, 1.0
    %v1601 = vadd.f32 %v1557, 1.0
    %v1602 = vadd.f32 %v1559, 1.0
    %v1603 = vadd.f32 %v1561, 1.0
    %v1604 = vadd.f32 %v1563, 1.0
    %v1605 = vadd.f32 %v1565, 1.0
    %v1606 = vadd.f32 %v1567, 1.0
    %v1607 = vadd.f32 %v1569, 1.0
    %v1608 = vadd.f32 %v1571, 1.0
    %v1609 = vadd.f32 %v1573, 1.0
    %v1610 = vadd.f32 %v1575, 1.0
    %v1611 = vadd.f32 %v1577, 1.0
    %v1612 = vadd.f32 %v1579, 1.0
    %v1613 = vadd.f32 %v1581, 1.0
    %v1614 = vrcp.pop %v1582
    %v1615 = vmul.f32 1.0, %v1614
    %v1616 = vrcp.pop %v1583
    %v1617 = vmul.f32 1.0, %v1616
    %v1618 = vrcp.pop %v1584
    %v1619 = vmul.f32 1.0, %v1618
    %v1620 = vrcp.pop %v1585
    %v1621 = vmul.f32 1.0, %v1620
    %v1622 = vrcp.pop %v1586
    %v1623 = vmul.f32 1.0, %v1622
    %v1624 = vrcp.pop %v1587
    %v1625 = vmul.f32 1.0, %v1624
    %v1626 = vrcp.pop %v1588
    %v1627 = vmul.f32 1.0, %v1626
    %v1628 = vrcp.pop %v1589
    %v1629 = vmul.f32 1.0, %v1628
    %v1630 = vrcp.pop %v1590
    %v1631 = vmul.f32 1.0, %v1630
    %v1632 = vrcp.pop %v1591
    %v1633 = vmul.f32 1.0, %v1632
    %v1634 = vrcp.pop %v1592
    %v1635 = vmul.f32 1.0, %v1634
    %v1636 = vrcp.pop %v1593
    %v1637 = vmul.f32 1.0, %v1636
    %v1638 = vrcp.pop %v1594
    %v1639 = vmul.f32 1.0, %v1638
    %v1640 = vrcp.pop %v1595
    %v1641 = vmul.f32 1.0, %v1640
    %v1642 = vrcp.pop %v1596
    %v1643 = vmul.f32 1.0, %v1642
    %v1644 = vrcp.pop %v1597
    %v1645 = vmul.f32 1.0, %v1644
    %v1646 = vrcp.pop %v1598
    %v1647 = vmul.f32 1.0, %v1646
    %v1648 = vrcp.pop %v1599
    %v1649 = vmul.f32 1.0, %v1648
    %v1650 = vrcp.pop %v1600
    %v1651 = vmul.f32 1.0, %v1650
    %v1652 = vrcp.pop %v1601
    %v1653 = vmul.f32 1.0, %v1652
    %v1654 = vrcp.pop %v1602
    %v1655 = vmul.f32 1.0, %v1654
    %v1656 = vrcp.pop %v1603
    %v1657 = vmul.f32 1.0, %v1656
    %v1658 = vrcp.pop %v1604
    %v1659 = vmul.f32 1.0, %v1658
    %v1660 = vrcp.pop %v1605
    %v1661 = vmul.f32 1.0, %v1660
    %v1662 = vrcp.pop %v1606
    %v1663 = vmul.f32 1.0, %v1662
    %v1664 = vrcp.pop %v1607
    %v1665 = vmul.f32 1.0, %v1664
    %v1666 = vrcp.pop %v1608
    %v1667 = vmul.f32 1.0, %v1666
    %v1668 = vrcp.pop %v1609
    %v1669 = vmul.f32 1.0, %v1668
    %v1670 = vrcp.pop %v1610
    %v1671 = vmul.f32 1.0, %v1670
    %v1672 = vrcp.pop %v1611
    %v1673 = vmul.f32 1.0, %v1672
    %v1674 = vrcp.pop %v1612
    %v1675 = vmul.f32 1.0, %v1674
    %v1676 = vrcp.pop %v1613
    %v1677 = vmul.f32 1.0, %v1676
    %v1678 = vld [vmem:[%s6] sm:$0x1]
    %v1680 = vlaneseq
    %v1681 = vshrl.u32 %v1680, 7
    %v1682 = vsub.s32 0, %v1681
    %v1683 = vrot.slane %v1678, %v1682
    %v1685 = vadd.f32 %v978, %v1683
    %v1686 = vadd.f32 %v983, %v1683
    %v1687 = vadd.f32 %v988, %v1683
    %v1688 = vadd.f32 %v993, %v1683
    %v1689 = vadd.f32 %v998, %v1683
    %v1690 = vadd.f32 %v1003, %v1683
    %v1691 = vadd.f32 %v1008, %v1683
    %v1692 = vadd.f32 %v1013, %v1683
    %v1693 = vadd.f32 %v1018, %v1683
    %v1694 = vadd.f32 %v1023, %v1683
    %v1695 = vadd.f32 %v1028, %v1683
    %v1696 = vadd.f32 %v1033, %v1683
    %v1697 = vadd.f32 %v1038, %v1683
    %v1698 = vadd.f32 %v1043, %v1683
    %v1699 = vadd.f32 %v1048, %v1683
    %v1700 = vadd.f32 %v1053, %v1683
    %v1701 = vld [vmem:[%s7] sm:$0x1]
    %v1703 = vlaneseq
    %v1704 = vshrl.u32 %v1703, 7
    %v1705 = vsub.s32 0, %v1704
    %v1706 = vrot.slane %v1701, %v1705
    %v1708 = vadd.f32 %v1332, %v1706
    %v1709 = vadd.f32 %v1337, %v1706
    %v1710 = vadd.f32 %v1342, %v1706
    %v1711 = vadd.f32 %v1347, %v1706
    %v1712 = vadd.f32 %v1352, %v1706
    %v1713 = vadd.f32 %v1357, %v1706
    %v1714 = vadd.f32 %v1362, %v1706
    %v1715 = vadd.f32 %v1367, %v1706
    %v1716 = vadd.f32 %v1372, %v1706
    %v1717 = vadd.f32 %v1377, %v1706
    %v1718 = vadd.f32 %v1382, %v1706
    %v1719 = vadd.f32 %v1387, %v1706
    %v1720 = vadd.f32 %v1392, %v1706
    %v1721 = vadd.f32 %v1397, %v1706
    %v1722 = vadd.f32 %v1402, %v1706
    %v1723 = vadd.f32 %v1407, %v1706
    %v1724 = vmul.f32 %v1615, %v1708
    %v1725 = vmul.f32 %v1619, %v1709
    %v1726 = vmul.f32 %v1623, %v1710
    %v1727 = vmul.f32 %v1627, %v1711
    %v1728 = vmul.f32 %v1631, %v1712
    %v1729 = vmul.f32 %v1635, %v1713
    %v1730 = vmul.f32 %v1639, %v1714
    %v1731 = vmul.f32 %v1643, %v1715
    %v1732 = vmul.f32 %v1647, %v1716
    %v1733 = vmul.f32 %v1651, %v1717
    %v1734 = vmul.f32 %v1655, %v1718
    %v1735 = vmul.f32 %v1659, %v1719
    %v1736 = vmul.f32 %v1663, %v1720
    %v1737 = vmul.f32 %v1667, %v1721
    %v1738 = vmul.f32 %v1671, %v1722
    %v1739 = vmul.f32 %v1675, %v1723
    %v1740 = vadd.f32 %v1685, %v1724
    %v1741 = vadd.f32 %v1686, %v1725
    %v1742 = vadd.f32 %v1687, %v1726
    %v1743 = vadd.f32 %v1688, %v1727
    %v1744 = vadd.f32 %v1689, %v1728
    %v1745 = vadd.f32 %v1690, %v1729
    %v1746 = vadd.f32 %v1691, %v1730
    %v1747 = vadd.f32 %v1692, %v1731
    %v1748 = vadd.f32 %v1693, %v1732
    %v1749 = vadd.f32 %v1694, %v1733
    %v1750 = vadd.f32 %v1695, %v1734
    %v1751 = vadd.f32 %v1696, %v1735
    %v1752 = vadd.f32 %v1697, %v1736
    %v1753 = vadd.f32 %v1698, %v1737
    %v1754 = vadd.f32 %v1699, %v1738
    %v1755 = vadd.f32 %v1700, %v1739
    %v1756 = vtanh.pop %v1740
    %v1757 = vtanh.pop %v1741
    %v1758 = vtanh.pop %v1742
    %v1759 = vtanh.pop %v1743
    %v1760 = vtanh.pop %v1744
    %v1761 = vtanh.pop %v1745
    %v1762 = vtanh.pop %v1746
    %v1763 = vtanh.pop %v1747
    %v1764 = vtanh.pop %v1748
    %v1765 = vtanh.pop %v1749
    %v1766 = vtanh.pop %v1750
    %v1767 = vtanh.pop %v1751
    %v1768 = vtanh.pop %v1752
    %v1769 = vtanh.pop %v1753
    %v1770 = vtanh.pop %v1754
    %v1771 = vtanh.pop %v1755
    %v1772 = vsub.f32 %v686, %v1756
    %v1773 = vsub.f32 %v687, %v1757
    %v1774 = vsub.f32 %v688, %v1758
    %v1775 = vsub.f32 %v689, %v1759
    %v1776 = vsub.f32 %v690, %v1760
    %v1777 = vsub.f32 %v691, %v1761
    %v1778 = vsub.f32 %v692, %v1762
    %v1779 = vsub.f32 %v693, %v1763
    %v1780 = vsub.f32 %v694, %v1764
    %v1781 = vsub.f32 %v695, %v1765
    %v1782 = vsub.f32 %v696, %v1766
    %v1783 = vsub.f32 %v697, %v1767
    %v1784 = vsub.f32 %v698, %v1768
    %v1785 = vsub.f32 %v699, %v1769
    %v1786 = vsub.f32 %v700, %v1770
    %v1787 = vsub.f32 %v701, %v1771
    %v1788 = vmul.f32 %v1617, %v1772
    %v1789 = vmul.f32 %v1621, %v1773
    %v1790 = vmul.f32 %v1625, %v1774
    %v1791 = vmul.f32 %v1629, %v1775
    %v1792 = vmul.f32 %v1633, %v1776
    %v1793 = vmul.f32 %v1637, %v1777
    %v1794 = vmul.f32 %v1641, %v1778
    %v1795 = vmul.f32 %v1645, %v1779
    %v1796 = vmul.f32 %v1649, %v1780
    %v1797 = vmul.f32 %v1653, %v1781
    %v1798 = vmul.f32 %v1657, %v1782
    %v1799 = vmul.f32 %v1661, %v1783
    %v1800 = vmul.f32 %v1665, %v1784
    %v1801 = vmul.f32 %v1669, %v1785
    %v1802 = vmul.f32 %v1673, %v1786
    %v1803 = vmul.f32 %v1677, %v1787
    %v1804 = vadd.f32 %v1756, %v1788
    %v1805 = vadd.f32 %v1757, %v1789
    %v1806 = vadd.f32 %v1758, %v1790
    %v1807 = vadd.f32 %v1759, %v1791
    %v1808 = vadd.f32 %v1760, %v1792
    %v1809 = vadd.f32 %v1761, %v1793
    %v1810 = vadd.f32 %v1762, %v1794
    %v1811 = vadd.f32 %v1763, %v1795
    %v1812 = vadd.f32 %v1764, %v1796
    %v1813 = vadd.f32 %v1765, %v1797
    %v1814 = vadd.f32 %v1766, %v1798
    %v1815 = vadd.f32 %v1767, %v1799
    %v1816 = vadd.f32 %v1768, %v1800
    %v1817 = vadd.f32 %v1769, %v1801
    %v1818 = vadd.f32 %v1770, %v1802
    %v1819 = vadd.f32 %v1771, %v1803
    %1820 = vst [vmem:[#allocation8] sm:$0xff] %v1804
    %1821 = vst [vmem:[#allocation8 + $0x8] sm:$0xff] %v1805
    %1822 = vst [vmem:[#allocation8 + $0x10] sm:$0xff] %v1806
    %1823 = vst [vmem:[#allocation8 + $0x18] sm:$0xff] %v1807
    %1824 = vst [vmem:[#allocation8 + $0x20] sm:$0xff] %v1808
    %1825 = vst [vmem:[#allocation8 + $0x28] sm:$0xff] %v1809
    %1826 = vst [vmem:[#allocation8 + $0x30] sm:$0xff] %v1810
    %1827 = vst [vmem:[#allocation8 + $0x38] sm:$0xff] %v1811
    %1828 = vst [vmem:[#allocation8 + $0x40] sm:$0xff] %v1812
    %1829 = vst [vmem:[#allocation8 + $0x48] sm:$0xff] %v1813
    %1830 = vst [vmem:[#allocation8 + $0x50] sm:$0xff] %v1814
    %1831 = vst [vmem:[#allocation8 + $0x58] sm:$0xff] %v1815
    %1832 = vst [vmem:[#allocation8 + $0x60] sm:$0xff] %v1816
    %1833 = vst [vmem:[#allocation8 + $0x68] sm:$0xff] %v1817
    %1834 = vst [vmem:[#allocation8 + $0x70] sm:$0xff] %v1818
    %1835 = vst [vmem:[#allocation8 + $0x78] sm:$0xff] %v1819
    // Predicated region
    $region46: #{tpu_custom_call.1} parent=1 // pred_check
      _
    $region47: #{tpu_custom_call.1} parent=1 // pred_check_branch
      %1837 = sbr.rel (0) target = $region49
    $region48: #{tpu_custom_call.1} parent=1 // pred_region
      %s1839 = ssub.s32 2048, 2048
      %1840 = vsyncadd [#allocation4], %s1839
      %s1841 = sshll.u32 [#allocation8], 4
      %s1842 = int_to_ptr.vmem [resolvable:$true] %s1841
      %1847 = dma.vmem_to_hbm [thread:$0]  %s1842, 2048, %s8, [#allocation4], 128, 128, 8
    $region49: #{tpu_custom_call.1} parent=1 // pred_fallthru
      _
    // Predicated region
    $region50: #{tpu_custom_call.1} parent=1 // pred_check
      _
    $region51: #{tpu_custom_call.1} parent=1 // pred_check_branch
      %1849 = sbr.rel (0) target = $region53
    $region52: #{tpu_custom_call.1} parent=1 // pred_region
      %1850 = dma.done [#allocation4], 2048
    $region53: #{tpu_custom_call.1} parent=1 // pred_fallthru
      _
    %1851 = vsyncpa [#allocation3], 1
    %1852 = vsyncpa [#allocation6], 1
    %1853 = vsyncpa [#allocation4], 1

</llo_original>
